<compile_context>
chip_gen: v6e
topology: v6e:2x2x1
jax: 0.10.0
libtpu: 0.0.40
codegen_flags: <defaults>
</compile_context>

<pallas_src>
import functools
import math

import jax
import jax.numpy as jnp
from jax import lax
from jax.experimental import pallas as pl
from jax.experimental.pallas import tpu as pltpu


# ----------------------------------------------------------------------------
# helpers
# ----------------------------------------------------------------------------
def _choose_chunk(L, target, bytes_per_row=1, budget=24 << 20):
    """Largest 8-aligned divisor of L that fits `target` and a VMEM budget."""
    target = int(max(8, min(target, budget // max(int(bytes_per_row), 1))))
    if L <= target:
        return L
    for c in range(min(target, L), 7, -1):
        if L % c == 0 and c % 8 == 0:
            return c
    # No sublane-aligned divisor <= target.  Fall back to the full length only
    # if that keeps VMEM bounded; otherwise ask the caller to pad L.
    if L * bytes_per_row <= 4 * budget:
        return L
    raise ValueError(
        f"sequence length {L} has no multiple-of-8 divisor <= {target}; pad L "
        "to a multiple of 8 (the kernel requires L % chunk == 0).")


def _weight_spec(w):
    """Grid-invariant weight block: single-buffered (constant index_map)."""
    nd = w.ndim
    return pl.BlockSpec(w.shape, lambda b, l, _nd=nd: (0,) * _nd,
                        pipeline_mode=pl.Buffered(1))


# ----------------------------------------------------------------------------
# Per-layer kernel: one (batch, L-chunk) grid step = fused in_proj, causal
# depthwise conv (cross-chunk carry), per-state vectorized selective-scan
# chunk (cross-chunk state), gate, out_proj, residual + post-LayerNorm, and
# (last layer only) the fused sequence-mean accumulation.
# ----------------------------------------------------------------------------
def _mamba_layer_kernel(x_ref, Win_ref, Wconv_ref, bconv_ref, Wdbc_ref,
                        Wdt_ref, bdt_ref, Alog_ref, Dp_ref, Wout_ref,
                        g_ref, beta_ref, out_ref, h_scr, prev_scr,
                        *, R, N, K, mean_out, inv_L):
    # NOTE: correctness of the persistent VMEM carries (h_scr = SSM state,
    # prev_scr = previous chunk's conv input) requires the L-chunk axis to
    # remain the innermost, sequentially iterated ("arbitrary") grid axis.
    # The batch axis may be "parallel": carries are re-initialised at lc == 0.
    lc = pl.program_id(1)

    @pl.when(lc == 0)
    def _init():
        h_scr[...] = jnp.zeros_like(h_scr)
        prev_scr[...] = jnp.zeros_like(prev_scr)
        if mean_out:
            out_ref[...] = jnp.zeros_like(out_ref)

    x = x_ref[0]                                    # (TL, D) f32
    TL = x.shape[0]
    E = Dp_ref.shape[1]
    wdtype = Win_ref.dtype

    # time index along the chunk (sublane axis), reused for all masks
    tidx = lax.broadcasted_iota(jnp.int32, (TL, 1), 0)

    # ---- fused in_proj: x @ [Winx | Winr] -----------------------------------
    proj = jnp.dot(x.astype(wdtype), Win_ref[...],
                   preferred_element_type=jnp.float32)          # (TL, 2E)
    xin = proj[:, :E]
    res = proj[:, E:]

    # ---- causal depthwise conv (carry = previous chunk's conv input) --------
    # tap k needs xin[t + k - (K-1)]; rows falling before this chunk come from
    # the previous chunk (zeros at lc == 0).  roll + select stays in XLU/VPU
    # slots instead of materialising concat + unaligned-slice copies.
    prev = prev_scr[...]                            # (TL, E)
    prev_scr[...] = xin
    xc = jnp.zeros((TL, E), jnp.float32) + bconv_ref[...]
    for k in range(K):
        s = K - 1 - k
        if s == 0:
            tap = xin
        else:
            tap = jnp.where(tidx < s,
                            pltpu.roll(prev, s, axis=0),
                            pltpu.roll(xin, s, axis=0))
        xc = xc + tap * Wconv_ref[k]
    xc = xc * jax.nn.sigmoid(xc)                    # SiLU

    # ---- fused, lane-padded x_proj: xc @ [Wdtin | WB | WC | 0] ---------------
    dbc = jnp.dot(xc.astype(wdtype), Wdbc_ref[...],
                  preferred_element_type=jnp.float32)           # (TL, P)
    # dt projection consumes the whole lane-aligned dbc against a row-zero-
    # padded Wdt, so the dt path needs no sub-vreg slicing.
    dt = jnp.dot(dbc.astype(wdtype), Wdt_ref[...],
                 preferred_element_type=jnp.float32) + bdt_ref[...]
    dt = jax.nn.softplus(dt)                        # (TL, E)

    # ---- selective scan ------------------------------------------------------
    # h_t = exp(dt_t*A)*h_{t-1} + dt_t*B_t*xc_t ;  y_t = C_t . h_t
    # Processed per SSM state n (N small) so every temporary is a 2-D (TL, E)
    # tile: time is on sublanes, the Hillis-Steele shifts are native sublane
    # rotations, and peak live scan VMEM is O(TL*E) instead of O(TL*N*E).
    A = -jnp.exp(Alog_ref[...])                     # (N, E)
    dtxc = dt * xc
    h0 = h_scr[...]                                 # (N, E) carried-in state

    y = jnp.zeros((TL, E), jnp.float32)
    h_last = []
    for n in range(N):
        a_n = jnp.exp(dt * A[n:n + 1, :])           # (TL, E), values in (0,1]
        b_n = dtxc * dbc[:, R + n:R + n + 1]        # (TL, E)
        d = 1
        while d < TL:                               # Hillis-Steele doubling
            mask = tidx < d
            a_sh = jnp.where(mask, 1.0, pltpu.roll(a_n, d, axis=0))
            b_sh = jnp.where(mask, 0.0, pltpu.roll(b_n, d, axis=0))
            b_n = b_n + a_n * b_sh                  # uses the old a_n
            a_n = a_n * a_sh
            d *= 2
        h_n = a_n * h0[n:n + 1, :] + b_n            # states for this n, all t
        h_last.append(h_n[TL - 1:TL, :])
        y = y + h_n * dbc[:, R + N + n:R + N + n + 1]
    h_scr[...] = jnp.concatenate(h_last, axis=0)    # carry state to next chunk

    # ---- D skip, SiLU gate, out_proj ----------------------------------------
    y = y + xc * Dp_ref[...]
    y = y * (res * jax.nn.sigmoid(res))
    out = jnp.dot(y.astype(wdtype), Wout_ref[...],
                  preferred_element_type=jnp.float32)           # (TL, D)

    # ---- residual add (dropout == identity) + post-LayerNorm over D ----------
    xr = out + x
    mu = jnp.mean(xr, axis=-1, keepdims=True)
    var = jnp.mean((xr - mu) ** 2, axis=-1, keepdims=True)
    normed = (xr - mu) * lax.rsqrt(var + 1e-5) * g_ref[...] + beta_ref[...]

    if mean_out:
        # fused sequence mean: (1,1,D) output block is resident across the L
        # axis; accumulate sums, scale by 1/L on the last chunk.
        out_ref[0] = out_ref[0] + jnp.sum(normed, axis=0, keepdims=True)

        @pl.when(lc == pl.num_programs(1) - 1)
        def _finalize():
            out_ref[0] = out_ref[0] * inv_L
    else:
        out_ref[0] = normed


def mamba_layer(x, p, *, chunk=128, weights_dtype=jnp.float32, mean_out=False):
    B, L, D = x.shape
    E = p["Winx"].shape[1]
    N = p["WB"].shape[1]
    K = p["Wconv"].shape[0]
    R = p["Wdtin"].shape[1]
    P = ((R + 2 * N + 127) // 128) * 128            # lane-padded x_proj width

    # rough per-time-row VMEM estimate (activations + scan temporaries +
    # double-buffered I/O blocks) used to cap the chunk on small-VMEM parts.
    bytes_per_row = 4 * (12 * E + 2 * P + 6 * D)
    TL = _choose_chunk(L, chunk, bytes_per_row)
    Lc = L // TL
    assert L % TL == 0
    assert TL >= K - 1, "chunk must be >= d_conv - 1"

    # -- weight repacking (pure layout change, identical math) -----------------
    f32 = jnp.float32
    Win = jnp.concatenate([p["Winx"], p["Winr"]], axis=1).astype(weights_dtype)
    Wdbc = jnp.concatenate(
        [p["Wdtin"], p["WB"], p["WC"],
         jnp.zeros((E, P - R - 2 * N), f32)], axis=1).astype(weights_dtype)
    Wdt_ext = jnp.concatenate(
        [p["Wdt"], jnp.zeros((P - R, E), f32)], axis=0).astype(weights_dtype)
    Wout = p["Wout"].astype(weights_dtype)
    weights = [Win, p["Wconv"], p["bconv"], Wdbc, Wdt_ext, p["bdt"],
               p["Alog"], p["Dp"], Wout, p["gamma"], p["beta"]]

    kernel = functools.partial(_mamba_layer_kernel, R=R, N=N, K=K,
                               mean_out=mean_out, inv_L=1.0 / float(L))

    if mean_out:
        out_shape = jax.ShapeDtypeStruct((B, 1, D), jnp.float32)
        out_spec = pl.BlockSpec((1, 1, D), lambda b, l: (b, 0, 0))
    else:
        out_shape = jax.ShapeDtypeStruct((B, L, D), jnp.float32)
        out_spec = pl.BlockSpec((1, TL, D), lambda b, l: (b, l, 0))

    log_tl = max(1, math.ceil(math.log2(max(TL, 2))))
    flops = (2 * B * L * (D * 2 * E + E * P + P * E + E * D)
             + B * L * N * E * (4 * log_tl + 10))
    transcendentals = B * L * (N * E + 4 * E)
    bytes_accessed = (4 * B * L * D * (1 if mean_out else 2)
                      + sum(int(w.size) * w.dtype.itemsize for w in weights))

    out = pl.pallas_call(
        kernel,
        out_shape=out_shape,
        grid_spec=pltpu.PrefetchScalarGridSpec(
            num_scalar_prefetch=0,
            # batch axis outer ("parallel", megacore-shardable); the L-chunk
            # axis MUST stay innermost + "arbitrary": the VMEM carries (SSM
            # state, conv input) are threaded across it.
            grid=(B, Lc),
            in_specs=[pl.BlockSpec((1, TL, D), lambda b, l: (b, l, 0))]
                     + [_weight_spec(w) for w in weights],
            out_specs=out_spec,
            scratch_shapes=[pltpu.VMEM((N, E), jnp.float32),     # SSM state
                            pltpu.VMEM((TL, E), jnp.float32)]),  # prev conv in
        compiler_params=pltpu.CompilerParams(
            dimension_semantics=("parallel", "arbitrary"),
            vmem_limit_bytes=48 * 1024 * 1024),
        cost_estimate=pl.CostEstimate(flops=flops,
                                      transcendentals=transcendentals,
                                      bytes_accessed=bytes_accessed),
    )(x, *weights)

    return out[:, 0, :] if mean_out else out


def mamba_model(x, params, chunk=128, weights_dtype=jnp.float32):
    """Full MambaModel forward: n_layers blocks then mean over L."""
    n = len(params)
    for i, p in enumerate(params):
        x = mamba_layer(x, p, chunk=chunk, weights_dtype=weights_dtype,
                        mean_out=(i == n - 1))
    return x


# ----------------------------------------------------------------------------
# Pure-JAX reference (same math, HIGHEST-precision matmuls) for correctness.
# ----------------------------------------------------------------------------
def mamba_layer_ref(x, p):
    hp = jax.lax.Precision.HIGHEST
    B, L, D = x.shape
    K = p["Wconv"].shape[0]
    N = p["WB"].shape[1]
    xin = jnp.dot(x, p["Winx"], precision=hp)
    res = jnp.dot(x, p["Winr"], precision=hp)
    xpad = jnp.pad(xin, ((0, 0), (K - 1, 0), (0, 0)))
    xc = sum(xpad[:, k:k + L, :] * p["Wconv"][k] for k in range(K)) + p["bconv"]
    xc = xc * jax.nn.sigmoid(xc)
    dt = jax.nn.softplus(
        jnp.dot(jnp.dot(xc, p["Wdtin"], precision=hp), p["Wdt"], precision=hp)
        + p["bdt"])
    Bm = jnp.dot(xc, p["WB"], precision=hp)
    Cm = jnp.dot(xc, p["WC"], precision=hp)
    A = -jnp.exp(p["Alog"])                                    # (N, E)
    dA = jnp.exp(dt[:, :, None, :] * A[None, None])            # (B, L, N, E)
    dBx = dt[:, :, None, :] * Bm[..., None] * xc[:, :, None, :]

    def scan_fn(h, inp):
        dA_t, dBx_t, C_t = inp
        h = dA_t * h + dBx_t
        y = jnp.sum(h * C_t[..., None], axis=-2)
        return h, y

    h0 = jnp.zeros((B, N, xc.shape[-1]), jnp.float32)
    _, ys = lax.scan(scan_fn, h0,
                     (dA.transpose(1, 0, 2, 3), dBx.transpose(1, 0, 2, 3),
                      Cm.transpose(1, 0, 2)))
    y = ys.transpose(1, 0, 2)
    y = y + xc * p["Dp"]
    y = y * (res * jax.nn.sigmoid(res))
    out = jnp.dot(y, p["Wout"], precision=hp)
    xr = out + x
    mu = xr.mean(-1, keepdims=True)
    var = ((xr - mu) ** 2).mean(-1, keepdims=True)
    return (xr - mu) / jnp.sqrt(var + 1e-5) * p["gamma"] + p["beta"]


def mamba_model_ref(x, params):
    for p in params:
        x = mamba_layer_ref(x, p)
    return x.mean(axis=1)


# ----------------------------------------------------------------------------
# Deterministic parameter init (synthetic; shapes follow the standard Mamba block)
# ----------------------------------------------------------------------------
def init_params(key, n_layers, d_model, d_inner, d_state, d_conv, dt_rank):
    layers = []
    for l in range(n_layers):
        keys = jax.random.split(jax.random.fold_in(key, l), 8)

        def nrm(k, shape, scale):
            return jax.random.normal(k, shape, jnp.float32) * scale

        u = jax.random.uniform(jax.random.fold_in(key, 1000 + l), (1, d_inner),
                               jnp.float32)
        dt0 = jnp.exp(u * (math.log(0.1) - math.log(1e-3)) + math.log(1e-3))
        bdt = dt0 + jnp.log(-jnp.expm1(-dt0))          # inverse softplus

        p = dict(
            Winx=nrm(keys[0], (d_model, d_inner), d_model ** -0.5),
            Winr=nrm(keys[1], (d_model, d_inner), d_model ** -0.5),
            Wconv=nrm(keys[2], (d_conv, d_inner), d_conv ** -0.5),
            bconv=jnp.zeros((1, d_inner), jnp.float32),
            Wdtin=nrm(keys[3], (d_inner, dt_rank), d_inner ** -0.5),
            WB=nrm(keys[4], (d_inner, d_state), d_inner ** -0.5),
            WC=nrm(keys[5], (d_inner, d_state), d_inner ** -0.5),
            Wdt=nrm(keys[6], (dt_rank, d_inner), dt_rank ** -0.5),
            bdt=bdt,
            Alog=jnp.log(jnp.broadcast_to(
                jnp.arange(1, d_state + 1, dtype=jnp.float32)[:, None],
                (d_state, d_inner))),                   # stored (N, E)
            Dp=jnp.ones((1, d_inner), jnp.float32),
            Wout=nrm(keys[7], (d_inner, d_model), d_inner ** -0.5),
            gamma=jnp.ones((1, d_model), jnp.float32),
            beta=jnp.zeros((1, d_model), jnp.float32),
        )
        layers.append(p)
    return layers


if __name__ == "__main__":
    def run_case(seed, B, L, d_model, n_layers, d_state, d_conv, expand, chunk,
                 weights_dtype, tol):
        d_inner = expand * d_model
        dt_rank = math.ceil(d_model / 16)
        key = jax.random.PRNGKey(seed)
        params = init_params(key, n_layers, d_model, d_inner, d_state,
                             d_conv, dt_rank)
        x = jax.random.normal(jax.random.fold_in(key, 7), (B, L, d_model),
                              jnp.float32)
        out = jax.block_until_ready(
            mamba_model(x, params, chunk=chunk, weights_dtype=weights_dtype))
        assert out.shape == (B, d_model), out.shape
        ref = mamba_model_ref(x, params)
        err = float(jnp.max(jnp.abs(out - ref)))
        assert err < tol, f"mismatch vs JAX reference: max abs err = {err}"
        return err

    # tiny shapes, single L-chunk per batch (exercises the fused-mean epilogue)
    run_case(seed=0, B=2, L=8, d_model=32, n_layers=2, d_state=8, d_conv=4,
             expand=2, chunk=64, weights_dtype=jnp.float32, tol=5e-3)
    # multi-chunk path: conv carry, SSM-state carry, mean accumulation over lc
    run_case(seed=1, B=2, L=64, d_model=128, n_layers=2, d_state=8, d_conv=4,
             expand=2, chunk=16, weights_dtype=jnp.float32, tol=5e-3)
    # bf16-weight fast path (f32 accumulation / scan); the looser tolerance is
    # the expected weight-quantization error vs the f32 reference.
    run_case(seed=2, B=2, L=64, d_model=128, n_layers=2, d_state=8, d_conv=4,
             expand=2, chunk=32, weights_dtype=jnp.bfloat16, tol=1.2e-1)

    print("KERNEL_OK")
</pallas_src>

<mosaic_0001>
module attributes {stable_mosaic.version = 11 : i64} {
  func.func @_mamba_layer_kernel(%arg0: i32, %arg1: i32, %arg2: memref<1x8x32xf32, #tpu.memory_space<vmem>>, %arg3: memref<32x128xf32, #tpu.memory_space<vmem>>, %arg4: memref<4x64xf32, #tpu.memory_space<vmem>>, %arg5: memref<1x64xf32, #tpu.memory_space<vmem>>, %arg6: memref<64x128xf32, #tpu.memory_space<vmem>>, %arg7: memref<128x64xf32, #tpu.memory_space<vmem>>, %arg8: memref<1x64xf32, #tpu.memory_space<vmem>>, %arg9: memref<8x64xf32, #tpu.memory_space<vmem>>, %arg10: memref<1x64xf32, #tpu.memory_space<vmem>>, %arg11: memref<64x32xf32, #tpu.memory_space<vmem>>, %arg12: memref<1x32xf32, #tpu.memory_space<vmem>>, %arg13: memref<1x32xf32, #tpu.memory_space<vmem>>, %arg14: memref<1x8x32xf32, #tpu.memory_space<vmem>>, %arg15: memref<8x64xf32, #tpu.memory_space<vmem>>, %arg16: memref<8x64xf32, #tpu.memory_space<vmem>>) attributes {dimension_semantics = [#tpu.dimension_semantics<parallel>, #tpu.dimension_semantics<arbitrary>], iteration_bounds = array<i64: 2, 1>, scalar_prefetch = 0 : i64, scratch_operands = 2 : i64, tpu.core_type = #tpu.core_type<tc>, window_params = [{transform_indices = @transform_0, window_bounds = array<i64: 1, 8, 32>}, {pipeline_mode = #tpu.pipeline_mode<synchronous>, transform_indices = @transform_1, window_bounds = array<i64: 32, 128>}, {pipeline_mode = #tpu.pipeline_mode<synchronous>, transform_indices = @transform_2, window_bounds = array<i64: 4, 64>}, {pipeline_mode = #tpu.pipeline_mode<synchronous>, transform_indices = @transform_3, window_bounds = array<i64: 1, 64>}, {pipeline_mode = #tpu.pipeline_mode<synchronous>, transform_indices = @transform_4, window_bounds = array<i64: 64, 128>}, {pipeline_mode = #tpu.pipeline_mode<synchronous>, transform_indices = @transform_5, window_bounds = array<i64: 128, 64>}, {pipeline_mode = #tpu.pipeline_mode<synchronous>, transform_indices = @transform_6, window_bounds = array<i64: 1, 64>}, {pipeline_mode = #tpu.pipeline_mode<synchronous>, transform_indices = @transform_7, window_bounds = array<i64: 8, 64>}, {pipeline_mode = #tpu.pipeline_mode<synchronous>, transform_indices = @transform_8, window_bounds = array<i64: 1, 64>}, {pipeline_mode = #tpu.pipeline_mode<synchronous>, transform_indices = @transform_9, window_bounds = array<i64: 64, 32>}, {pipeline_mode = #tpu.pipeline_mode<synchronous>, transform_indices = @transform_10, window_bounds = array<i64: 1, 32>}, {pipeline_mode = #tpu.pipeline_mode<synchronous>, transform_indices = @transform_11, window_bounds = array<i64: 1, 32>}, {transform_indices = @transform_12, window_bounds = array<i64: 1, 8, 32>}]} {
    %c0_i32 = arith.constant 0 : i32
    %0 = arith.cmpi eq, %arg1, %c0_i32 : i32
    %1 = arith.extui %0 : i1 to i32
    %c0_i32_0 = arith.constant 0 : i32
    %2 = arith.cmpi ne, %1, %c0_i32_0 : i32
    scf.if %2 {
      %cst_179 = arith.constant 0.000000e+00 : f32
      %626 = vector.broadcast %cst_179 : f32 to vector<8x64xf32>
      %c0_180 = arith.constant 0 : index
      %c0_181 = arith.constant 0 : index
      %627 = vector.load %arg15[%c0_180, %c0_181] : memref<8x64xf32, #tpu.memory_space<vmem>>, vector<8x64xf32>
      tpu.vector_store %arg15[%c0_180, %c0_181], %626 {strides = array<i32>} : memref<8x64xf32, #tpu.memory_space<vmem>>, vector<8x64xf32>,
      %cst_182 = arith.constant 0.000000e+00 : f32
      %628 = vector.broadcast %cst_182 : f32 to vector<8x64xf32>
      %c0_183 = arith.constant 0 : index
      %c0_184 = arith.constant 0 : index
      %629 = vector.load %arg16[%c0_183, %c0_184] : memref<8x64xf32, #tpu.memory_space<vmem>>, vector<8x64xf32>
      tpu.vector_store %arg16[%c0_183, %c0_184], %628 {strides = array<i32>} : memref<8x64xf32, #tpu.memory_space<vmem>>, vector<8x64xf32>,
    } else {
    }
    %c0 = arith.constant 0 : index
    %c0_1 = arith.constant 0 : index
    %c0_2 = arith.constant 0 : index
    %3 = vector.load %arg2[%c0, %c0_1, %c0_2] : memref<1x8x32xf32, #tpu.memory_space<vmem>>, vector<1x8x32xf32>
    %4 = vector.shape_cast %3 : vector<1x8x32xf32> to vector<8x32xf32>
    %5 = tpu.iota {dimensions = array<i32: 0>} : vector<8x1xi32>
    %c0_3 = arith.constant 0 : index
    %c0_4 = arith.constant 0 : index
    %6 = vector.load %arg3[%c0_3, %c0_4] : memref<32x128xf32, #tpu.memory_space<vmem>>, vector<32x128xf32>
    %cst = arith.constant dense<0.000000e+00> : vector<8x128xf32>
    %7 = tpu.matmul %4, %6, %cst {dimension_numbers = #tpu.dot_dimension_numbers<[1], [0], [0], [1], [0, 0, 1, 1], [], []>} : vector<8x32xf32>, vector<32x128xf32>, vector<8x128xf32> -> vector<8x128xf32>
    %8 = vector.extract_strided_slice %7 {offsets = [0, 0], sizes = [8, 64], strides = [1, 1]} : vector<8x128xf32> to vector<8x64xf32>
    %9 = vector.extract_strided_slice %7 {offsets = [0, 64], sizes = [8, 64], strides = [1, 1]} : vector<8x128xf32> to vector<8x64xf32>
    %c0_5 = arith.constant 0 : index
    %c0_6 = arith.constant 0 : index
    %10 = vector.load %arg16[%c0_5, %c0_6] : memref<8x64xf32, #tpu.memory_space<vmem>>, vector<8x64xf32>
    %c0_7 = arith.constant 0 : index
    %c0_8 = arith.constant 0 : index
    %11 = vector.load %arg16[%c0_7, %c0_8] : memref<8x64xf32, #tpu.memory_space<vmem>>, vector<8x64xf32>
    tpu.vector_store %arg16[%c0_7, %c0_8], %8 {strides = array<i32>} : memref<8x64xf32, #tpu.memory_space<vmem>>, vector<8x64xf32>,
    %cst_9 = arith.constant 0.000000e+00 : f32
    %12 = vector.broadcast %cst_9 : f32 to vector<8x64xf32>
    %c0_10 = arith.constant 0 : index
    %c0_11 = arith.constant 0 : index
    %13 = vector.load %arg5[%c0_10, %c0_11] : memref<1x64xf32, #tpu.memory_space<vmem>>, vector<1x64xf32>
    %14 = vector.broadcast %13 : vector<1x64xf32> to vector<8x64xf32>
    %15 = arith.addf %12, %14 : vector<8x64xf32>
    %c3_i32 = arith.constant 3 : i32
    %16 = vector.broadcast %c3_i32 : i32 to vector<8x1xi32>
    %17 = arith.cmpi slt, %5, %16 : vector<8x1xi32>
    %c3_i32_12 = arith.constant 3 : i32
    %18 = tpu.dynamic_rotate %10 by %c3_i32_12 dim 0 : vector<8x64xf32>, i32 -> vector<8x64xf32>
    %c3_i32_13 = arith.constant 3 : i32
    %19 = tpu.dynamic_rotate %8 by %c3_i32_13 dim 0 : vector<8x64xf32>, i32 -> vector<8x64xf32>
    %20 = vector.shape_cast %17 : vector<8x1xi1> to vector<8x1xi1>
    %21 = vector.broadcast %20 : vector<8x1xi1> to vector<8x64xi1>
    %22 = arith.select %21, %18, %19 : vector<8x64xi1>, vector<8x64xf32>
    %c0_14 = arith.constant 0 : index
    %c0_15 = arith.constant 0 : index
    %23 = vector.load %arg4[%c0_14, %c0_15] : memref<4x64xf32, #tpu.memory_space<vmem>>, vector<1x64xf32>
    %24 = vector.shape_cast %23 : vector<1x64xf32> to vector<64xf32>
    %25 = vector.shape_cast %24 : vector<64xf32> to vector<1x64xf32>
    %26 = vector.broadcast %25 : vector<1x64xf32> to vector<8x64xf32>
    %27 = arith.mulf %22, %26 : vector<8x64xf32>
    %28 = arith.addf %15, %27 : vector<8x64xf32>
    %c2_i32 = arith.constant 2 : i32
    %29 = vector.broadcast %c2_i32 : i32 to vector<8x1xi32>
    %30 = arith.cmpi slt, %5, %29 : vector<8x1xi32>
    %c2_i32_16 = arith.constant 2 : i32
    %31 = tpu.dynamic_rotate %10 by %c2_i32_16 dim 0 : vector<8x64xf32>, i32 -> vector<8x64xf32>
    %c2_i32_17 = arith.constant 2 : i32
    %32 = tpu.dynamic_rotate %8 by %c2_i32_17 dim 0 : vector<8x64xf32>, i32 -> vector<8x64xf32>
    %33 = vector.shape_cast %30 : vector<8x1xi1> to vector<8x1xi1>
    %34 = vector.broadcast %33 : vector<8x1xi1> to vector<8x64xi1>
    %35 = arith.select %34, %31, %32 : vector<8x64xi1>, vector<8x64xf32>
    %c1 = arith.constant 1 : index
    %c0_18 = arith.constant 0 : index
    %36 = vector.load %arg4[%c1, %c0_18] : memref<4x64xf32, #tpu.memory_space<vmem>>, vector<1x64xf32>
    %37 = vector.shape_cast %36 : vector<1x64xf32> to vector<64xf32>
    %38 = vector.shape_cast %37 : vector<64xf32> to vector<1x64xf32>
    %39 = vector.broadcast %38 : vector<1x64xf32> to vector<8x64xf32>
    %40 = arith.mulf %35, %39 : vector<8x64xf32>
    %41 = arith.addf %28, %40 : vector<8x64xf32>
    %c1_i32 = arith.constant 1 : i32
    %42 = vector.broadcast %c1_i32 : i32 to vector<8x1xi32>
    %43 = arith.cmpi slt, %5, %42 : vector<8x1xi32>
    %c1_i32_19 = arith.constant 1 : i32
    %44 = tpu.dynamic_rotate %10 by %c1_i32_19 dim 0 : vector<8x64xf32>, i32 -> vector<8x64xf32>
    %c1_i32_20 = arith.constant 1 : i32
    %45 = tpu.dynamic_rotate %8 by %c1_i32_20 dim 0 : vector<8x64xf32>, i32 -> vector<8x64xf32>
    %46 = vector.shape_cast %43 : vector<8x1xi1> to vector<8x1xi1>
    %47 = vector.broadcast %46 : vector<8x1xi1> to vector<8x64xi1>
    %48 = arith.select %47, %44, %45 : vector<8x64xi1>, vector<8x64xf32>
    %c2 = arith.constant 2 : index
    %c0_21 = arith.constant 0 : index
    %49 = vector.load %arg4[%c2, %c0_21] : memref<4x64xf32, #tpu.memory_space<vmem>>, vector<1x64xf32>
    %50 = vector.shape_cast %49 : vector<1x64xf32> to vector<64xf32>
    %51 = vector.shape_cast %50 : vector<64xf32> to vector<1x64xf32>
    %52 = vector.broadcast %51 : vector<1x64xf32> to vector<8x64xf32>
    %53 = arith.mulf %48, %52 : vector<8x64xf32>
    %54 = arith.addf %41, %53 : vector<8x64xf32>
    %c3 = arith.constant 3 : index
    %c0_22 = arith.constant 0 : index
    %55 = vector.load %arg4[%c3, %c0_22] : memref<4x64xf32, #tpu.memory_space<vmem>>, vector<1x64xf32>
    %56 = vector.shape_cast %55 : vector<1x64xf32> to vector<64xf32>
    %57 = vector.shape_cast %56 : vector<64xf32> to vector<1x64xf32>
    %58 = vector.broadcast %57 : vector<1x64xf32> to vector<8x64xf32>
    %59 = arith.mulf %8, %58 : vector<8x64xf32>
    %60 = arith.addf %54, %59 : vector<8x64xf32>
    %61 = arith.negf %60 : vector<8x64xf32>
    %62 = math.exp %61 : vector<8x64xf32>
    %cst_23 = arith.constant 1.000000e+00 : f32
    %63 = vector.broadcast %cst_23 : f32 to vector<8x64xf32>
    %64 = arith.addf %63, %62 : vector<8x64xf32>
    %65 = arith.divf %63, %64 : vector<8x64xf32>
    %66 = arith.mulf %60, %65 : vector<8x64xf32>
    %c0_24 = arith.constant 0 : index
    %c0_25 = arith.constant 0 : index
    %67 = vector.load %arg6[%c0_24, %c0_25] : memref<64x128xf32, #tpu.memory_space<vmem>>, vector<64x128xf32>
    %cst_26 = arith.constant dense<0.000000e+00> : vector<8x128xf32>
    %68 = tpu.matmul %66, %67, %cst_26 {dimension_numbers = #tpu.dot_dimension_numbers<[1], [0], [0], [1], [0, 0, 1, 1], [], []>} : vector<8x64xf32>, vector<64x128xf32>, vector<8x128xf32> -> vector<8x128xf32>
    %c0_27 = arith.constant 0 : index
    %c0_28 = arith.constant 0 : index
    %69 = vector.load %arg7[%c0_27, %c0_28] : memref<128x64xf32, #tpu.memory_space<vmem>>, vector<128x64xf32>
    %cst_29 = arith.constant dense<0.000000e+00> : vector<8x64xf32>
    %70 = tpu.matmul %68, %69, %cst_29 {dimension_numbers = #tpu.dot_dimension_numbers<[1], [0], [0], [1], [0, 0, 1, 1], [], []>} : vector<8x128xf32>, vector<128x64xf32>, vector<8x64xf32> -> vector<8x64xf32>
    %c0_30 = arith.constant 0 : index
    %c0_31 = arith.constant 0 : index
    %71 = vector.load %arg8[%c0_30, %c0_31] : memref<1x64xf32, #tpu.memory_space<vmem>>, vector<1x64xf32>
    %72 = vector.broadcast %71 : vector<1x64xf32> to vector<8x64xf32>
    %73 = arith.addf %70, %72 : vector<8x64xf32>
    %cst_32 = arith.constant 0.000000e+00 : f32
    %74 = vector.broadcast %cst_32 : f32 to vector<8x64xf32>
    %75 = arith.maximumf %73, %74 : vector<8x64xf32>
    %76 = vector.broadcast %cst_32 : f32 to vector<8x64xf32>
    %77 = arith.subf %73, %76 : vector<8x64xf32>
    %78 = arith.cmpf one, %77, %77 : vector<8x64xf32>
    %79 = vector.broadcast %cst_32 : f32 to vector<8x64xf32>
    %80 = arith.addf %73, %79 : vector<8x64xf32>
    %81 = math.absf %77 : vector<8x64xf32>
    %cst_33 = arith.constant 0.000000e+00 : f32
    %82 = vector.broadcast %cst_33 : f32 to vector<8x64xf32>
    %83 = arith.subf %82, %81 : vector<8x64xf32>
    %84 = math.exp %83 : vector<8x64xf32>
    %85 = math.log1p %84 : vector<8x64xf32>
    %86 = arith.addf %75, %85 : vector<8x64xf32>
    %87 = arith.select %78, %80, %86 : vector<8x64xi1>, vector<8x64xf32>
    %c0_34 = arith.constant 0 : index
    %c0_35 = arith.constant 0 : index
    %88 = vector.load %arg9[%c0_34, %c0_35] : memref<8x64xf32, #tpu.memory_space<vmem>>, vector<8x64xf32>
    %89 = math.exp %88 : vector<8x64xf32>
    %cst_36 = arith.constant 0.000000e+00 : f32
    %90 = vector.broadcast %cst_36 : f32 to vector<8x64xf32>
    %91 = arith.subf %90, %89 : vector<8x64xf32>
    %92 = arith.mulf %87, %66 : vector<8x64xf32>
    %c0_37 = arith.constant 0 : index
    %c0_38 = arith.constant 0 : index
    %93 = vector.load %arg15[%c0_37, %c0_38] : memref<8x64xf32, #tpu.memory_space<vmem>>, vector<8x64xf32>
    %cst_39 = arith.constant 0.000000e+00 : f32
    %94 = vector.broadcast %cst_39 : f32 to vector<8x64xf32>
    %95 = vector.extract_strided_slice %91 {offsets = [0, 0], sizes = [1, 64], strides = [1, 1]} : vector<8x64xf32> to vector<1x64xf32>
    %96 = vector.broadcast %95 : vector<1x64xf32> to vector<8x64xf32>
    %97 = arith.mulf %87, %96 : vector<8x64xf32>
    %98 = math.exp %97 : vector<8x64xf32>
    %99 = vector.extract_strided_slice %68 {offsets = [0, 2], sizes = [8, 1], strides = [1, 1]} : vector<8x128xf32> to vector<8x1xf32>
    %100 = vector.broadcast %99 : vector<8x1xf32> to vector<8x64xf32>
    %101 = arith.mulf %92, %100 : vector<8x64xf32>
    %c1_i32_40 = arith.constant 1 : i32
    %102 = vector.broadcast %c1_i32_40 : i32 to vector<8x1xi32>
    %103 = arith.cmpi slt, %5, %102 : vector<8x1xi32>
    %c1_i32_41 = arith.constant 1 : i32
    %104 = tpu.dynamic_rotate %98 by %c1_i32_41 dim 0 : vector<8x64xf32>, i32 -> vector<8x64xf32>
    %cst_42 = arith.constant 1.000000e+00 : f32
    %105 = vector.shape_cast %103 : vector<8x1xi1> to vector<8x1xi1>
    %106 = vector.broadcast %105 : vector<8x1xi1> to vector<8x64xi1>
    %107 = vector.broadcast %cst_42 : f32 to vector<8x64xf32>
    %108 = arith.select %106, %107, %104 : vector<8x64xi1>, vector<8x64xf32>
    %c1_i32_43 = arith.constant 1 : i32
    %109 = tpu.dynamic_rotate %101 by %c1_i32_43 dim 0 : vector<8x64xf32>, i32 -> vector<8x64xf32>
    %cst_44 = arith.constant 0.000000e+00 : f32
    %110 = vector.shape_cast %103 : vector<8x1xi1> to vector<8x1xi1>
    %111 = vector.broadcast %110 : vector<8x1xi1> to vector<8x64xi1>
    %112 = vector.broadcast %cst_44 : f32 to vector<8x64xf32>
    %113 = arith.select %111, %112, %109 : vector<8x64xi1>, vector<8x64xf32>
    %114 = arith.mulf %98, %113 : vector<8x64xf32>
    %115 = arith.addf %101, %114 : vector<8x64xf32>
    %116 = arith.mulf %98, %108 : vector<8x64xf32>
    %c2_i32_45 = arith.constant 2 : i32
    %117 = vector.broadcast %c2_i32_45 : i32 to vector<8x1xi32>
    %118 = arith.cmpi slt, %5, %117 : vector<8x1xi32>
    %c2_i32_46 = arith.constant 2 : i32
    %119 = tpu.dynamic_rotate %116 by %c2_i32_46 dim 0 : vector<8x64xf32>, i32 -> vector<8x64xf32>
    %cst_47 = arith.constant 1.000000e+00 : f32
    %120 = vector.shape_cast %118 : vector<8x1xi1> to vector<8x1xi1>
    %121 = vector.broadcast %120 : vector<8x1xi1> to vector<8x64xi1>
    %122 = vector.broadcast %cst_47 : f32 to vector<8x64xf32>
    %123 = arith.select %121, %122, %119 : vector<8x64xi1>, vector<8x64xf32>
    %c2_i32_48 = arith.constant 2 : i32
    %124 = tpu.dynamic_rotate %115 by %c2_i32_48 dim 0 : vector<8x64xf32>, i32 -> vector<8x64xf32>
    %cst_49 = arith.constant 0.000000e+00 : f32
    %125 = vector.shape_cast %118 : vector<8x1xi1> to vector<8x1xi1>
    %126 = vector.broadcast %125 : vector<8x1xi1> to vector<8x64xi1>
    %127 = vector.broadcast %cst_49 : f32 to vector<8x64xf32>
    %128 = arith.select %126, %127, %124 : vector<8x64xi1>, vector<8x64xf32>
    %129 = arith.mulf %116, %128 : vector<8x64xf32>
    %130 = arith.addf %115, %129 : vector<8x64xf32>
    %131 = arith.mulf %116, %123 : vector<8x64xf32>
    %c4_i32 = arith.constant 4 : i32
    %132 = vector.broadcast %c4_i32 : i32 to vector<8x1xi32>
    %133 = arith.cmpi slt, %5, %132 : vector<8x1xi32>
    %c4_i32_50 = arith.constant 4 : i32
    %134 = tpu.dynamic_rotate %131 by %c4_i32_50 dim 0 : vector<8x64xf32>, i32 -> vector<8x64xf32>
    %cst_51 = arith.constant 1.000000e+00 : f32
    %135 = vector.shape_cast %133 : vector<8x1xi1> to vector<8x1xi1>
    %136 = vector.broadcast %135 : vector<8x1xi1> to vector<8x64xi1>
    %137 = vector.broadcast %cst_51 : f32 to vector<8x64xf32>
    %138 = arith.select %136, %137, %134 : vector<8x64xi1>, vector<8x64xf32>
    %c4_i32_52 = arith.constant 4 : i32
    %139 = tpu.dynamic_rotate %130 by %c4_i32_52 dim 0 : vector<8x64xf32>, i32 -> vector<8x64xf32>
    %cst_53 = arith.constant 0.000000e+00 : f32
    %140 = vector.shape_cast %133 : vector<8x1xi1> to vector<8x1xi1>
    %141 = vector.broadcast %140 : vector<8x1xi1> to vector<8x64xi1>
    %142 = vector.broadcast %cst_53 : f32 to vector<8x64xf32>
    %143 = arith.select %141, %142, %139 : vector<8x64xi1>, vector<8x64xf32>
    %144 = arith.mulf %131, %143 : vector<8x64xf32>
    %145 = arith.addf %130, %144 : vector<8x64xf32>
    %146 = arith.mulf %131, %138 : vector<8x64xf32>
    %147 = vector.extract_strided_slice %93 {offsets = [0, 0], sizes = [1, 64], strides = [1, 1]} : vector<8x64xf32> to vector<1x64xf32>
    %148 = vector.broadcast %147 : vector<1x64xf32> to vector<8x64xf32>
    %149 = arith.mulf %146, %148 : vector<8x64xf32>
    %150 = arith.addf %149, %145 : vector<8x64xf32>
    %151 = vector.extract_strided_slice %150 {offsets = [7, 0], sizes = [1, 64], strides = [1, 1]} : vector<8x64xf32> to vector<1x64xf32>
    %152 = vector.extract_strided_slice %68 {offsets = [0, 10], sizes = [8, 1], strides = [1, 1]} : vector<8x128xf32> to vector<8x1xf32>
    %153 = vector.broadcast %152 : vector<8x1xf32> to vector<8x64xf32>
    %154 = arith.mulf %150, %153 : vector<8x64xf32>
    %155 = arith.addf %94, %154 : vector<8x64xf32>
    %156 = vector.extract_strided_slice %91 {offsets = [1, 0], sizes = [1, 64], strides = [1, 1]} : vector<8x64xf32> to vector<1x64xf32>
    %157 = vector.broadcast %156 : vector<1x64xf32> to vector<8x64xf32>
    %158 = arith.mulf %87, %157 : vector<8x64xf32>
    %159 = math.exp %158 : vector<8x64xf32>
    %160 = vector.extract_strided_slice %68 {offsets = [0, 3], sizes = [8, 1], strides = [1, 1]} : vector<8x128xf32> to vector<8x1xf32>
    %161 = vector.broadcast %160 : vector<8x1xf32> to vector<8x64xf32>
    %162 = arith.mulf %92, %161 : vector<8x64xf32>
    %c1_i32_54 = arith.constant 1 : i32
    %163 = vector.broadcast %c1_i32_54 : i32 to vector<8x1xi32>
    %164 = arith.cmpi slt, %5, %163 : vector<8x1xi32>
    %c1_i32_55 = arith.constant 1 : i32
    %165 = tpu.dynamic_rotate %159 by %c1_i32_55 dim 0 : vector<8x64xf32>, i32 -> vector<8x64xf32>
    %cst_56 = arith.constant 1.000000e+00 : f32
    %166 = vector.shape_cast %164 : vector<8x1xi1> to vector<8x1xi1>
    %167 = vector.broadcast %166 : vector<8x1xi1> to vector<8x64xi1>
    %168 = vector.broadcast %cst_56 : f32 to vector<8x64xf32>
    %169 = arith.select %167, %168, %165 : vector<8x64xi1>, vector<8x64xf32>
    %c1_i32_57 = arith.constant 1 : i32
    %170 = tpu.dynamic_rotate %162 by %c1_i32_57 dim 0 : vector<8x64xf32>, i32 -> vector<8x64xf32>
    %cst_58 = arith.constant 0.000000e+00 : f32
    %171 = vector.shape_cast %164 : vector<8x1xi1> to vector<8x1xi1>
    %172 = vector.broadcast %171 : vector<8x1xi1> to vector<8x64xi1>
    %173 = vector.broadcast %cst_58 : f32 to vector<8x64xf32>
    %174 = arith.select %172, %173, %170 : vector<8x64xi1>, vector<8x64xf32>
    %175 = arith.mulf %159, %174 : vector<8x64xf32>
    %176 = arith.addf %162, %175 : vector<8x64xf32>
    %177 = arith.mulf %159, %169 : vector<8x64xf32>
    %c2_i32_59 = arith.constant 2 : i32
    %178 = vector.broadcast %c2_i32_59 : i32 to vector<8x1xi32>
    %179 = arith.cmpi slt, %5, %178 : vector<8x1xi32>
    %c2_i32_60 = arith.constant 2 : i32
    %180 = tpu.dynamic_rotate %177 by %c2_i32_60 dim 0 : vector<8x64xf32>, i32 -> vector<8x64xf32>
    %cst_61 = arith.constant 1.000000e+00 : f32
    %181 = vector.shape_cast %179 : vector<8x1xi1> to vector<8x1xi1>
    %182 = vector.broadcast %181 : vector<8x1xi1> to vector<8x64xi1>
    %183 = vector.broadcast %cst_61 : f32 to vector<8x64xf32>
    %184 = arith.select %182, %183, %180 : vector<8x64xi1>, vector<8x64xf32>
    %c2_i32_62 = arith.constant 2 : i32
    %185 = tpu.dynamic_rotate %176 by %c2_i32_62 dim 0 : vector<8x64xf32>, i32 -> vector<8x64xf32>
    %cst_63 = arith.constant 0.000000e+00 : f32
    %186 = vector.shape_cast %179 : vector<8x1xi1> to vector<8x1xi1>
    %187 = vector.broadcast %186 : vector<8x1xi1> to vector<8x64xi1>
    %188 = vector.broadcast %cst_63 : f32 to vector<8x64xf32>
    %189 = arith.select %187, %188, %185 : vector<8x64xi1>, vector<8x64xf32>
    %190 = arith.mulf %177, %189 : vector<8x64xf32>
    %191 = arith.addf %176, %190 : vector<8x64xf32>
    %192 = arith.mulf %177, %184 : vector<8x64xf32>
    %c4_i32_64 = arith.constant 4 : i32
    %193 = vector.broadcast %c4_i32_64 : i32 to vector<8x1xi32>
    %194 = arith.cmpi slt, %5, %193 : vector<8x1xi32>
    %c4_i32_65 = arith.constant 4 : i32
    %195 = tpu.dynamic_rotate %192 by %c4_i32_65 dim 0 : vector<8x64xf32>, i32 -> vector<8x64xf32>
    %cst_66 = arith.constant 1.000000e+00 : f32
    %196 = vector.shape_cast %194 : vector<8x1xi1> to vector<8x1xi1>
    %197 = vector.broadcast %196 : vector<8x1xi1> to vector<8x64xi1>
    %198 = vector.broadcast %cst_66 : f32 to vector<8x64xf32>
    %199 = arith.select %197, %198, %195 : vector<8x64xi1>, vector<8x64xf32>
    %c4_i32_67 = arith.constant 4 : i32
    %200 = tpu.dynamic_rotate %191 by %c4_i32_67 dim 0 : vector<8x64xf32>, i32 -> vector<8x64xf32>
    %cst_68 = arith.constant 0.000000e+00 : f32
    %201 = vector.shape_cast %194 : vector<8x1xi1> to vector<8x1xi1>
    %202 = vector.broadcast %201 : vector<8x1xi1> to vector<8x64xi1>
    %203 = vector.broadcast %cst_68 : f32 to vector<8x64xf32>
    %204 = arith.select %202, %203, %200 : vector<8x64xi1>, vector<8x64xf32>
    %205 = arith.mulf %192, %204 : vector<8x64xf32>
    %206 = arith.addf %191, %205 : vector<8x64xf32>
    %207 = arith.mulf %192, %199 : vector<8x64xf32>
    %208 = vector.extract_strided_slice %93 {offsets = [1, 0], sizes = [1, 64], strides = [1, 1]} : vector<8x64xf32> to vector<1x64xf32>
    %209 = vector.broadcast %208 : vector<1x64xf32> to vector<8x64xf32>
    %210 = arith.mulf %207, %209 : vector<8x64xf32>
    %211 = arith.addf %210, %206 : vector<8x64xf32>
    %212 = vector.extract_strided_slice %211 {offsets = [7, 0], sizes = [1, 64], strides = [1, 1]} : vector<8x64xf32> to vector<1x64xf32>
    %213 = vector.extract_strided_slice %68 {offsets = [0, 11], sizes = [8, 1], strides = [1, 1]} : vector<8x128xf32> to vector<8x1xf32>
    %214 = vector.broadcast %213 : vector<8x1xf32> to vector<8x64xf32>
    %215 = arith.mulf %211, %214 : vector<8x64xf32>
    %216 = arith.addf %155, %215 : vector<8x64xf32>
    %217 = vector.extract_strided_slice %91 {offsets = [2, 0], sizes = [1, 64], strides = [1, 1]} : vector<8x64xf32> to vector<1x64xf32>
    %218 = vector.broadcast %217 : vector<1x64xf32> to vector<8x64xf32>
    %219 = arith.mulf %87, %218 : vector<8x64xf32>
    %220 = math.exp %219 : vector<8x64xf32>
    %221 = vector.extract_strided_slice %68 {offsets = [0, 4], sizes = [8, 1], strides = [1, 1]} : vector<8x128xf32> to vector<8x1xf32>
    %222 = vector.broadcast %221 : vector<8x1xf32> to vector<8x64xf32>
    %223 = arith.mulf %92, %222 : vector<8x64xf32>
    %c1_i32_69 = arith.constant 1 : i32
    %224 = vector.broadcast %c1_i32_69 : i32 to vector<8x1xi32>
    %225 = arith.cmpi slt, %5, %224 : vector<8x1xi32>
    %c1_i32_70 = arith.constant 1 : i32
    %226 = tpu.dynamic_rotate %220 by %c1_i32_70 dim 0 : vector<8x64xf32>, i32 -> vector<8x64xf32>
    %cst_71 = arith.constant 1.000000e+00 : f32
    %227 = vector.shape_cast %225 : vector<8x1xi1> to vector<8x1xi1>
    %228 = vector.broadcast %227 : vector<8x1xi1> to vector<8x64xi1>
    %229 = vector.broadcast %cst_71 : f32 to vector<8x64xf32>
    %230 = arith.select %228, %229, %226 : vector<8x64xi1>, vector<8x64xf32>
    %c1_i32_72 = arith.constant 1 : i32
    %231 = tpu.dynamic_rotate %223 by %c1_i32_72 dim 0 : vector<8x64xf32>, i32 -> vector<8x64xf32>
    %cst_73 = arith.constant 0.000000e+00 : f32
    %232 = vector.shape_cast %225 : vector<8x1xi1> to vector<8x1xi1>
    %233 = vector.broadcast %232 : vector<8x1xi1> to vector<8x64xi1>
    %234 = vector.broadcast %cst_73 : f32 to vector<8x64xf32>
    %235 = arith.select %233, %234, %231 : vector<8x64xi1>, vector<8x64xf32>
    %236 = arith.mulf %220, %235 : vector<8x64xf32>
    %237 = arith.addf %223, %236 : vector<8x64xf32>
    %238 = arith.mulf %220, %230 : vector<8x64xf32>
    %c2_i32_74 = arith.constant 2 : i32
    %239 = vector.broadcast %c2_i32_74 : i32 to vector<8x1xi32>
    %240 = arith.cmpi slt, %5, %239 : vector<8x1xi32>
    %c2_i32_75 = arith.constant 2 : i32
    %241 = tpu.dynamic_rotate %238 by %c2_i32_75 dim 0 : vector<8x64xf32>, i32 -> vector<8x64xf32>
    %cst_76 = arith.constant 1.000000e+00 : f32
    %242 = vector.shape_cast %240 : vector<8x1xi1> to vector<8x1xi1>
    %243 = vector.broadcast %242 : vector<8x1xi1> to vector<8x64xi1>
    %244 = vector.broadcast %cst_76 : f32 to vector<8x64xf32>
    %245 = arith.select %243, %244, %241 : vector<8x64xi1>, vector<8x64xf32>
    %c2_i32_77 = arith.constant 2 : i32
    %246 = tpu.dynamic_rotate %237 by %c2_i32_77 dim 0 : vector<8x64xf32>, i32 -> vector<8x64xf32>
    %cst_78 = arith.constant 0.000000e+00 : f32
    %247 = vector.shape_cast %240 : vector<8x1xi1> to vector<8x1xi1>
    %248 = vector.broadcast %247 : vector<8x1xi1> to vector<8x64xi1>
    %249 = vector.broadcast %cst_78 : f32 to vector<8x64xf32>
    %250 = arith.select %248, %249, %246 : vector<8x64xi1>, vector<8x64xf32>
    %251 = arith.mulf %238, %250 : vector<8x64xf32>
    %252 = arith.addf %237, %251 : vector<8x64xf32>
    %253 = arith.mulf %238, %245 : vector<8x64xf32>
    %c4_i32_79 = arith.constant 4 : i32
    %254 = vector.broadcast %c4_i32_79 : i32 to vector<8x1xi32>
    %255 = arith.cmpi slt, %5, %254 : vector<8x1xi32>
    %c4_i32_80 = arith.constant 4 : i32
    %256 = tpu.dynamic_rotate %253 by %c4_i32_80 dim 0 : vector<8x64xf32>, i32 -> vector<8x64xf32>
    %cst_81 = arith.constant 1.000000e+00 : f32
    %257 = vector.shape_cast %255 : vector<8x1xi1> to vector<8x1xi1>
    %258 = vector.broadcast %257 : vector<8x1xi1> to vector<8x64xi1>
    %259 = vector.broadcast %cst_81 : f32 to vector<8x64xf32>
    %260 = arith.select %258, %259, %256 : vector<8x64xi1>, vector<8x64xf32>
    %c4_i32_82 = arith.constant 4 : i32
    %261 = tpu.dynamic_rotate %252 by %c4_i32_82 dim 0 : vector<8x64xf32>, i32 -> vector<8x64xf32>
    %cst_83 = arith.constant 0.000000e+00 : f32
    %262 = vector.shape_cast %255 : vector<8x1xi1> to vector<8x1xi1>
    %263 = vector.broadcast %262 : vector<8x1xi1> to vector<8x64xi1>
    %264 = vector.broadcast %cst_83 : f32 to vector<8x64xf32>
    %265 = arith.select %263, %264, %261 : vector<8x64xi1>, vector<8x64xf32>
    %266 = arith.mulf %253, %265 : vector<8x64xf32>
    %267 = arith.addf %252, %266 : vector<8x64xf32>
    %268 = arith.mulf %253, %260 : vector<8x64xf32>
    %269 = vector.extract_strided_slice %93 {offsets = [2, 0], sizes = [1, 64], strides = [1, 1]} : vector<8x64xf32> to vector<1x64xf32>
    %270 = vector.broadcast %269 : vector<1x64xf32> to vector<8x64xf32>
    %271 = arith.mulf %268, %270 : vector<8x64xf32>
    %272 = arith.addf %271, %267 : vector<8x64xf32>
    %273 = vector.extract_strided_slice %272 {offsets = [7, 0], sizes = [1, 64], strides = [1, 1]} : vector<8x64xf32> to vector<1x64xf32>
    %274 = vector.extract_strided_slice %68 {offsets = [0, 12], sizes = [8, 1], strides = [1, 1]} : vector<8x128xf32> to vector<8x1xf32>
    %275 = vector.broadcast %274 : vector<8x1xf32> to vector<8x64xf32>
    %276 = arith.mulf %272, %275 : vector<8x64xf32>
    %277 = arith.addf %216, %276 : vector<8x64xf32>
    %278 = vector.extract_strided_slice %91 {offsets = [3, 0], sizes = [1, 64], strides = [1, 1]} : vector<8x64xf32> to vector<1x64xf32>
    %279 = vector.broadcast %278 : vector<1x64xf32> to vector<8x64xf32>
    %280 = arith.mulf %87, %279 : vector<8x64xf32>
    %281 = math.exp %280 : vector<8x64xf32>
    %282 = vector.extract_strided_slice %68 {offsets = [0, 5], sizes = [8, 1], strides = [1, 1]} : vector<8x128xf32> to vector<8x1xf32>
    %283 = vector.broadcast %282 : vector<8x1xf32> to vector<8x64xf32>
    %284 = arith.mulf %92, %283 : vector<8x64xf32>
    %c1_i32_84 = arith.constant 1 : i32
    %285 = vector.broadcast %c1_i32_84 : i32 to vector<8x1xi32>
    %286 = arith.cmpi slt, %5, %285 : vector<8x1xi32>
    %c1_i32_85 = arith.constant 1 : i32
    %287 = tpu.dynamic_rotate %281 by %c1_i32_85 dim 0 : vector<8x64xf32>, i32 -> vector<8x64xf32>
    %cst_86 = arith.constant 1.000000e+00 : f32
    %288 = vector.shape_cast %286 : vector<8x1xi1> to vector<8x1xi1>
    %289 = vector.broadcast %288 : vector<8x1xi1> to vector<8x64xi1>
    %290 = vector.broadcast %cst_86 : f32 to vector<8x64xf32>
    %291 = arith.select %289, %290, %287 : vector<8x64xi1>, vector<8x64xf32>
    %c1_i32_87 = arith.constant 1 : i32
    %292 = tpu.dynamic_rotate %284 by %c1_i32_87 dim 0 : vector<8x64xf32>, i32 -> vector<8x64xf32>
    %cst_88 = arith.constant 0.000000e+00 : f32
    %293 = vector.shape_cast %286 : vector<8x1xi1> to vector<8x1xi1>
    %294 = vector.broadcast %293 : vector<8x1xi1> to vector<8x64xi1>
    %295 = vector.broadcast %cst_88 : f32 to vector<8x64xf32>
    %296 = arith.select %294, %295, %292 : vector<8x64xi1>, vector<8x64xf32>
    %297 = arith.mulf %281, %296 : vector<8x64xf32>
    %298 = arith.addf %284, %297 : vector<8x64xf32>
    %299 = arith.mulf %281, %291 : vector<8x64xf32>
    %c2_i32_89 = arith.constant 2 : i32
    %300 = vector.broadcast %c2_i32_89 : i32 to vector<8x1xi32>
    %301 = arith.cmpi slt, %5, %300 : vector<8x1xi32>
    %c2_i32_90 = arith.constant 2 : i32
    %302 = tpu.dynamic_rotate %299 by %c2_i32_90 dim 0 : vector<8x64xf32>, i32 -> vector<8x64xf32>
    %cst_91 = arith.constant 1.000000e+00 : f32
    %303 = vector.shape_cast %301 : vector<8x1xi1> to vector<8x1xi1>
    %304 = vector.broadcast %303 : vector<8x1xi1> to vector<8x64xi1>
    %305 = vector.broadcast %cst_91 : f32 to vector<8x64xf32>
    %306 = arith.select %304, %305, %302 : vector<8x64xi1>, vector<8x64xf32>
    %c2_i32_92 = arith.constant 2 : i32
    %307 = tpu.dynamic_rotate %298 by %c2_i32_92 dim 0 : vector<8x64xf32>, i32 -> vector<8x64xf32>
    %cst_93 = arith.constant 0.000000e+00 : f32
    %308 = vector.shape_cast %301 : vector<8x1xi1> to vector<8x1xi1>
    %309 = vector.broadcast %308 : vector<8x1xi1> to vector<8x64xi1>
    %310 = vector.broadcast %cst_93 : f32 to vector<8x64xf32>
    %311 = arith.select %309, %310, %307 : vector<8x64xi1>, vector<8x64xf32>
    %312 = arith.mulf %299, %311 : vector<8x64xf32>
    %313 = arith.addf %298, %312 : vector<8x64xf32>
    %314 = arith.mulf %299, %306 : vector<8x64xf32>
    %c4_i32_94 = arith.constant 4 : i32
    %315 = vector.broadcast %c4_i32_94 : i32 to vector<8x1xi32>
    %316 = arith.cmpi slt, %5, %315 : vector<8x1xi32>
    %c4_i32_95 = arith.constant 4 : i32
    %317 = tpu.dynamic_rotate %314 by %c4_i32_95 dim 0 : vector<8x64xf32>, i32 -> vector<8x64xf32>
    %cst_96 = arith.constant 1.000000e+00 : f32
    %318 = vector.shape_cast %316 : vector<8x1xi1> to vector<8x1xi1>
    %319 = vector.broadcast %318 : vector<8x1xi1> to vector<8x64xi1>
    %320 = vector.broadcast %cst_96 : f32 to vector<8x64xf32>
    %321 = arith.select %319, %320, %317 : vector<8x64xi1>, vector<8x64xf32>
    %c4_i32_97 = arith.constant 4 : i32
    %322 = tpu.dynamic_rotate %313 by %c4_i32_97 dim 0 : vector<8x64xf32>, i32 -> vector<8x64xf32>
    %cst_98 = arith.constant 0.000000e+00 : f32
    %323 = vector.shape_cast %316 : vector<8x1xi1> to vector<8x1xi1>
    %324 = vector.broadcast %323 : vector<8x1xi1> to vector<8x64xi1>
    %325 = vector.broadcast %cst_98 : f32 to vector<8x64xf32>
    %326 = arith.select %324, %325, %322 : vector<8x64xi1>, vector<8x64xf32>
    %327 = arith.mulf %314, %326 : vector<8x64xf32>
    %328 = arith.addf %313, %327 : vector<8x64xf32>
    %329 = arith.mulf %314, %321 : vector<8x64xf32>
    %330 = vector.extract_strided_slice %93 {offsets = [3, 0], sizes = [1, 64], strides = [1, 1]} : vector<8x64xf32> to vector<1x64xf32>
    %331 = vector.broadcast %330 : vector<1x64xf32> to vector<8x64xf32>
    %332 = arith.mulf %329, %331 : vector<8x64xf32>
    %333 = arith.addf %332, %328 : vector<8x64xf32>
    %334 = vector.extract_strided_slice %333 {offsets = [7, 0], sizes = [1, 64], strides = [1, 1]} : vector<8x64xf32> to vector<1x64xf32>
    %335 = vector.extract_strided_slice %68 {offsets = [0, 13], sizes = [8, 1], strides = [1, 1]} : vector<8x128xf32> to vector<8x1xf32>
    %336 = vector.broadcast %335 : vector<8x1xf32> to vector<8x64xf32>
    %337 = arith.mulf %333, %336 : vector<8x64xf32>
    %338 = arith.addf %277, %337 : vector<8x64xf32>
    %339 = vector.extract_strided_slice %91 {offsets = [4, 0], sizes = [1, 64], strides = [1, 1]} : vector<8x64xf32> to vector<1x64xf32>
    %340 = vector.broadcast %339 : vector<1x64xf32> to vector<8x64xf32>
    %341 = arith.mulf %87, %340 : vector<8x64xf32>
    %342 = math.exp %341 : vector<8x64xf32>
    %343 = vector.extract_strided_slice %68 {offsets = [0, 6], sizes = [8, 1], strides = [1, 1]} : vector<8x128xf32> to vector<8x1xf32>
    %344 = vector.broadcast %343 : vector<8x1xf32> to vector<8x64xf32>
    %345 = arith.mulf %92, %344 : vector<8x64xf32>
    %c1_i32_99 = arith.constant 1 : i32
    %346 = vector.broadcast %c1_i32_99 : i32 to vector<8x1xi32>
    %347 = arith.cmpi slt, %5, %346 : vector<8x1xi32>
    %c1_i32_100 = arith.constant 1 : i32
    %348 = tpu.dynamic_rotate %342 by %c1_i32_100 dim 0 : vector<8x64xf32>, i32 -> vector<8x64xf32>
    %cst_101 = arith.constant 1.000000e+00 : f32
    %349 = vector.shape_cast %347 : vector<8x1xi1> to vector<8x1xi1>
    %350 = vector.broadcast %349 : vector<8x1xi1> to vector<8x64xi1>
    %351 = vector.broadcast %cst_101 : f32 to vector<8x64xf32>
    %352 = arith.select %350, %351, %348 : vector<8x64xi1>, vector<8x64xf32>
    %c1_i32_102 = arith.constant 1 : i32
    %353 = tpu.dynamic_rotate %345 by %c1_i32_102 dim 0 : vector<8x64xf32>, i32 -> vector<8x64xf32>
    %cst_103 = arith.constant 0.000000e+00 : f32
    %354 = vector.shape_cast %347 : vector<8x1xi1> to vector<8x1xi1>
    %355 = vector.broadcast %354 : vector<8x1xi1> to vector<8x64xi1>
    %356 = vector.broadcast %cst_103 : f32 to vector<8x64xf32>
    %357 = arith.select %355, %356, %353 : vector<8x64xi1>, vector<8x64xf32>
    %358 = arith.mulf %342, %357 : vector<8x64xf32>
    %359 = arith.addf %345, %358 : vector<8x64xf32>
    %360 = arith.mulf %342, %352 : vector<8x64xf32>
    %c2_i32_104 = arith.constant 2 : i32
    %361 = vector.broadcast %c2_i32_104 : i32 to vector<8x1xi32>
    %362 = arith.cmpi slt, %5, %361 : vector<8x1xi32>
    %c2_i32_105 = arith.constant 2 : i32
    %363 = tpu.dynamic_rotate %360 by %c2_i32_105 dim 0 : vector<8x64xf32>, i32 -> vector<8x64xf32>
    %cst_106 = arith.constant 1.000000e+00 : f32
    %364 = vector.shape_cast %362 : vector<8x1xi1> to vector<8x1xi1>
    %365 = vector.broadcast %364 : vector<8x1xi1> to vector<8x64xi1>
    %366 = vector.broadcast %cst_106 : f32 to vector<8x64xf32>
    %367 = arith.select %365, %366, %363 : vector<8x64xi1>, vector<8x64xf32>
    %c2_i32_107 = arith.constant 2 : i32
    %368 = tpu.dynamic_rotate %359 by %c2_i32_107 dim 0 : vector<8x64xf32>, i32 -> vector<8x64xf32>
    %cst_108 = arith.constant 0.000000e+00 : f32
    %369 = vector.shape_cast %362 : vector<8x1xi1> to vector<8x1xi1>
    %370 = vector.broadcast %369 : vector<8x1xi1> to vector<8x64xi1>
    %371 = vector.broadcast %cst_108 : f32 to vector<8x64xf32>
    %372 = arith.select %370, %371, %368 : vector<8x64xi1>, vector<8x64xf32>
    %373 = arith.mulf %360, %372 : vector<8x64xf32>
    %374 = arith.addf %359, %373 : vector<8x64xf32>
    %375 = arith.mulf %360, %367 : vector<8x64xf32>
    %c4_i32_109 = arith.constant 4 : i32
    %376 = vector.broadcast %c4_i32_109 : i32 to vector<8x1xi32>
    %377 = arith.cmpi slt, %5, %376 : vector<8x1xi32>
    %c4_i32_110 = arith.constant 4 : i32
    %378 = tpu.dynamic_rotate %375 by %c4_i32_110 dim 0 : vector<8x64xf32>, i32 -> vector<8x64xf32>
    %cst_111 = arith.constant 1.000000e+00 : f32
    %379 = vector.shape_cast %377 : vector<8x1xi1> to vector<8x1xi1>
    %380 = vector.broadcast %379 : vector<8x1xi1> to vector<8x64xi1>
    %381 = vector.broadcast %cst_111 : f32 to vector<8x64xf32>
    %382 = arith.select %380, %381, %378 : vector<8x64xi1>, vector<8x64xf32>
    %c4_i32_112 = arith.constant 4 : i32
    %383 = tpu.dynamic_rotate %374 by %c4_i32_112 dim 0 : vector<8x64xf32>, i32 -> vector<8x64xf32>
    %cst_113 = arith.constant 0.000000e+00 : f32
    %384 = vector.shape_cast %377 : vector<8x1xi1> to vector<8x1xi1>
    %385 = vector.broadcast %384 : vector<8x1xi1> to vector<8x64xi1>
    %386 = vector.broadcast %cst_113 : f32 to vector<8x64xf32>
    %387 = arith.select %385, %386, %383 : vector<8x64xi1>, vector<8x64xf32>
    %388 = arith.mulf %375, %387 : vector<8x64xf32>
    %389 = arith.addf %374, %388 : vector<8x64xf32>
    %390 = arith.mulf %375, %382 : vector<8x64xf32>
    %391 = vector.extract_strided_slice %93 {offsets = [4, 0], sizes = [1, 64], strides = [1, 1]} : vector<8x64xf32> to vector<1x64xf32>
    %392 = vector.broadcast %391 : vector<1x64xf32> to vector<8x64xf32>
    %393 = arith.mulf %390, %392 : vector<8x64xf32>
    %394 = arith.addf %393, %389 : vector<8x64xf32>
    %395 = vector.extract_strided_slice %394 {offsets = [7, 0], sizes = [1, 64], strides = [1, 1]} : vector<8x64xf32> to vector<1x64xf32>
    %396 = vector.extract_strided_slice %68 {offsets = [0, 14], sizes = [8, 1], strides = [1, 1]} : vector<8x128xf32> to vector<8x1xf32>
    %397 = vector.broadcast %396 : vector<8x1xf32> to vector<8x64xf32>
    %398 = arith.mulf %394, %397 : vector<8x64xf32>
    %399 = arith.addf %338, %398 : vector<8x64xf32>
    %400 = vector.extract_strided_slice %91 {offsets = [5, 0], sizes = [1, 64], strides = [1, 1]} : vector<8x64xf32> to vector<1x64xf32>
    %401 = vector.broadcast %400 : vector<1x64xf32> to vector<8x64xf32>
    %402 = arith.mulf %87, %401 : vector<8x64xf32>
    %403 = math.exp %402 : vector<8x64xf32>
    %404 = vector.extract_strided_slice %68 {offsets = [0, 7], sizes = [8, 1], strides = [1, 1]} : vector<8x128xf32> to vector<8x1xf32>
    %405 = vector.broadcast %404 : vector<8x1xf32> to vector<8x64xf32>
    %406 = arith.mulf %92, %405 : vector<8x64xf32>
    %c1_i32_114 = arith.constant 1 : i32
    %407 = vector.broadcast %c1_i32_114 : i32 to vector<8x1xi32>
    %408 = arith.cmpi slt, %5, %407 : vector<8x1xi32>
    %c1_i32_115 = arith.constant 1 : i32
    %409 = tpu.dynamic_rotate %403 by %c1_i32_115 dim 0 : vector<8x64xf32>, i32 -> vector<8x64xf32>
    %cst_116 = arith.constant 1.000000e+00 : f32
    %410 = vector.shape_cast %408 : vector<8x1xi1> to vector<8x1xi1>
    %411 = vector.broadcast %410 : vector<8x1xi1> to vector<8x64xi1>
    %412 = vector.broadcast %cst_116 : f32 to vector<8x64xf32>
    %413 = arith.select %411, %412, %409 : vector<8x64xi1>, vector<8x64xf32>
    %c1_i32_117 = arith.constant 1 : i32
    %414 = tpu.dynamic_rotate %406 by %c1_i32_117 dim 0 : vector<8x64xf32>, i32 -> vector<8x64xf32>
    %cst_118 = arith.constant 0.000000e+00 : f32
    %415 = vector.shape_cast %408 : vector<8x1xi1> to vector<8x1xi1>
    %416 = vector.broadcast %415 : vector<8x1xi1> to vector<8x64xi1>
    %417 = vector.broadcast %cst_118 : f32 to vector<8x64xf32>
    %418 = arith.select %416, %417, %414 : vector<8x64xi1>, vector<8x64xf32>
    %419 = arith.mulf %403, %418 : vector<8x64xf32>
    %420 = arith.addf %406, %419 : vector<8x64xf32>
    %421 = arith.mulf %403, %413 : vector<8x64xf32>
    %c2_i32_119 = arith.constant 2 : i32
    %422 = vector.broadcast %c2_i32_119 : i32 to vector<8x1xi32>
    %423 = arith.cmpi slt, %5, %422 : vector<8x1xi32>
    %c2_i32_120 = arith.constant 2 : i32
    %424 = tpu.dynamic_rotate %421 by %c2_i32_120 dim 0 : vector<8x64xf32>, i32 -> vector<8x64xf32>
    %cst_121 = arith.constant 1.000000e+00 : f32
    %425 = vector.shape_cast %423 : vector<8x1xi1> to vector<8x1xi1>
    %426 = vector.broadcast %425 : vector<8x1xi1> to vector<8x64xi1>
    %427 = vector.broadcast %cst_121 : f32 to vector<8x64xf32>
    %428 = arith.select %426, %427, %424 : vector<8x64xi1>, vector<8x64xf32>
    %c2_i32_122 = arith.constant 2 : i32
    %429 = tpu.dynamic_rotate %420 by %c2_i32_122 dim 0 : vector<8x64xf32>, i32 -> vector<8x64xf32>
    %cst_123 = arith.constant 0.000000e+00 : f32
    %430 = vector.shape_cast %423 : vector<8x1xi1> to vector<8x1xi1>
    %431 = vector.broadcast %430 : vector<8x1xi1> to vector<8x64xi1>
    %432 = vector.broadcast %cst_123 : f32 to vector<8x64xf32>
    %433 = arith.select %431, %432, %429 : vector<8x64xi1>, vector<8x64xf32>
    %434 = arith.mulf %421, %433 : vector<8x64xf32>
    %435 = arith.addf %420, %434 : vector<8x64xf32>
    %436 = arith.mulf %421, %428 : vector<8x64xf32>
    %c4_i32_124 = arith.constant 4 : i32
    %437 = vector.broadcast %c4_i32_124 : i32 to vector<8x1xi32>
    %438 = arith.cmpi slt, %5, %437 : vector<8x1xi32>
    %c4_i32_125 = arith.constant 4 : i32
    %439 = tpu.dynamic_rotate %436 by %c4_i32_125 dim 0 : vector<8x64xf32>, i32 -> vector<8x64xf32>
    %cst_126 = arith.constant 1.000000e+00 : f32
    %440 = vector.shape_cast %438 : vector<8x1xi1> to vector<8x1xi1>
    %441 = vector.broadcast %440 : vector<8x1xi1> to vector<8x64xi1>
    %442 = vector.broadcast %cst_126 : f32 to vector<8x64xf32>
    %443 = arith.select %441, %442, %439 : vector<8x64xi1>, vector<8x64xf32>
    %c4_i32_127 = arith.constant 4 : i32
    %444 = tpu.dynamic_rotate %435 by %c4_i32_127 dim 0 : vector<8x64xf32>, i32 -> vector<8x64xf32>
    %cst_128 = arith.constant 0.000000e+00 : f32
    %445 = vector.shape_cast %438 : vector<8x1xi1> to vector<8x1xi1>
    %446 = vector.broadcast %445 : vector<8x1xi1> to vector<8x64xi1>
    %447 = vector.broadcast %cst_128 : f32 to vector<8x64xf32>
    %448 = arith.select %446, %447, %444 : vector<8x64xi1>, vector<8x64xf32>
    %449 = arith.mulf %436, %448 : vector<8x64xf32>
    %450 = arith.addf %435, %449 : vector<8x64xf32>
    %451 = arith.mulf %436, %443 : vector<8x64xf32>
    %452 = vector.extract_strided_slice %93 {offsets = [5, 0], sizes = [1, 64], strides = [1, 1]} : vector<8x64xf32> to vector<1x64xf32>
    %453 = vector.broadcast %452 : vector<1x64xf32> to vector<8x64xf32>
    %454 = arith.mulf %451, %453 : vector<8x64xf32>
    %455 = arith.addf %454, %450 : vector<8x64xf32>
    %456 = vector.extract_strided_slice %455 {offsets = [7, 0], sizes = [1, 64], strides = [1, 1]} : vector<8x64xf32> to vector<1x64xf32>
    %457 = vector.extract_strided_slice %68 {offsets = [0, 15], sizes = [8, 1], strides = [1, 1]} : vector<8x128xf32> to vector<8x1xf32>
    %458 = vector.broadcast %457 : vector<8x1xf32> to vector<8x64xf32>
    %459 = arith.mulf %455, %458 : vector<8x64xf32>
    %460 = arith.addf %399, %459 : vector<8x64xf32>
    %461 = vector.extract_strided_slice %91 {offsets = [6, 0], sizes = [1, 64], strides = [1, 1]} : vector<8x64xf32> to vector<1x64xf32>
    %462 = vector.broadcast %461 : vector<1x64xf32> to vector<8x64xf32>
    %463 = arith.mulf %87, %462 : vector<8x64xf32>
    %464 = math.exp %463 : vector<8x64xf32>
    %465 = vector.extract_strided_slice %68 {offsets = [0, 8], sizes = [8, 1], strides = [1, 1]} : vector<8x128xf32> to vector<8x1xf32>
    %466 = vector.broadcast %465 : vector<8x1xf32> to vector<8x64xf32>
    %467 = arith.mulf %92, %466 : vector<8x64xf32>
    %c1_i32_129 = arith.constant 1 : i32
    %468 = vector.broadcast %c1_i32_129 : i32 to vector<8x1xi32>
    %469 = arith.cmpi slt, %5, %468 : vector<8x1xi32>
    %c1_i32_130 = arith.constant 1 : i32
    %470 = tpu.dynamic_rotate %464 by %c1_i32_130 dim 0 : vector<8x64xf32>, i32 -> vector<8x64xf32>
    %cst_131 = arith.constant 1.000000e+00 : f32
    %471 = vector.shape_cast %469 : vector<8x1xi1> to vector<8x1xi1>
    %472 = vector.broadcast %471 : vector<8x1xi1> to vector<8x64xi1>
    %473 = vector.broadcast %cst_131 : f32 to vector<8x64xf32>
    %474 = arith.select %472, %473, %470 : vector<8x64xi1>, vector<8x64xf32>
    %c1_i32_132 = arith.constant 1 : i32
    %475 = tpu.dynamic_rotate %467 by %c1_i32_132 dim 0 : vector<8x64xf32>, i32 -> vector<8x64xf32>
    %cst_133 = arith.constant 0.000000e+00 : f32
    %476 = vector.shape_cast %469 : vector<8x1xi1> to vector<8x1xi1>
    %477 = vector.broadcast %476 : vector<8x1xi1> to vector<8x64xi1>
    %478 = vector.broadcast %cst_133 : f32 to vector<8x64xf32>
    %479 = arith.select %477, %478, %475 : vector<8x64xi1>, vector<8x64xf32>
    %480 = arith.mulf %464, %479 : vector<8x64xf32>
    %481 = arith.addf %467, %480 : vector<8x64xf32>
    %482 = arith.mulf %464, %474 : vector<8x64xf32>
    %c2_i32_134 = arith.constant 2 : i32
    %483 = vector.broadcast %c2_i32_134 : i32 to vector<8x1xi32>
    %484 = arith.cmpi slt, %5, %483 : vector<8x1xi32>
    %c2_i32_135 = arith.constant 2 : i32
    %485 = tpu.dynamic_rotate %482 by %c2_i32_135 dim 0 : vector<8x64xf32>, i32 -> vector<8x64xf32>
    %cst_136 = arith.constant 1.000000e+00 : f32
    %486 = vector.shape_cast %484 : vector<8x1xi1> to vector<8x1xi1>
    %487 = vector.broadcast %486 : vector<8x1xi1> to vector<8x64xi1>
    %488 = vector.broadcast %cst_136 : f32 to vector<8x64xf32>
    %489 = arith.select %487, %488, %485 : vector<8x64xi1>, vector<8x64xf32>
    %c2_i32_137 = arith.constant 2 : i32
    %490 = tpu.dynamic_rotate %481 by %c2_i32_137 dim 0 : vector<8x64xf32>, i32 -> vector<8x64xf32>
    %cst_138 = arith.constant 0.000000e+00 : f32
    %491 = vector.shape_cast %484 : vector<8x1xi1> to vector<8x1xi1>
    %492 = vector.broadcast %491 : vector<8x1xi1> to vector<8x64xi1>
    %493 = vector.broadcast %cst_138 : f32 to vector<8x64xf32>
    %494 = arith.select %492, %493, %490 : vector<8x64xi1>, vector<8x64xf32>
    %495 = arith.mulf %482, %494 : vector<8x64xf32>
    %496 = arith.addf %481, %495 : vector<8x64xf32>
    %497 = arith.mulf %482, %489 : vector<8x64xf32>
    %c4_i32_139 = arith.constant 4 : i32
    %498 = vector.broadcast %c4_i32_139 : i32 to vector<8x1xi32>
    %499 = arith.cmpi slt, %5, %498 : vector<8x1xi32>
    %c4_i32_140 = arith.constant 4 : i32
    %500 = tpu.dynamic_rotate %497 by %c4_i32_140 dim 0 : vector<8x64xf32>, i32 -> vector<8x64xf32>
    %cst_141 = arith.constant 1.000000e+00 : f32
    %501 = vector.shape_cast %499 : vector<8x1xi1> to vector<8x1xi1>
    %502 = vector.broadcast %501 : vector<8x1xi1> to vector<8x64xi1>
    %503 = vector.broadcast %cst_141 : f32 to vector<8x64xf32>
    %504 = arith.select %502, %503, %500 : vector<8x64xi1>, vector<8x64xf32>
    %c4_i32_142 = arith.constant 4 : i32
    %505 = tpu.dynamic_rotate %496 by %c4_i32_142 dim 0 : vector<8x64xf32>, i32 -> vector<8x64xf32>
    %cst_143 = arith.constant 0.000000e+00 : f32
    %506 = vector.shape_cast %499 : vector<8x1xi1> to vector<8x1xi1>
    %507 = vector.broadcast %506 : vector<8x1xi1> to vector<8x64xi1>
    %508 = vector.broadcast %cst_143 : f32 to vector<8x64xf32>
    %509 = arith.select %507, %508, %505 : vector<8x64xi1>, vector<8x64xf32>
    %510 = arith.mulf %497, %509 : vector<8x64xf32>
    %511 = arith.addf %496, %510 : vector<8x64xf32>
    %512 = arith.mulf %497, %504 : vector<8x64xf32>
    %513 = vector.extract_strided_slice %93 {offsets = [6, 0], sizes = [1, 64], strides = [1, 1]} : vector<8x64xf32> to vector<1x64xf32>
    %514 = vector.broadcast %513 : vector<1x64xf32> to vector<8x64xf32>
    %515 = arith.mulf %512, %514 : vector<8x64xf32>
    %516 = arith.addf %515, %511 : vector<8x64xf32>
    %517 = vector.extract_strided_slice %516 {offsets = [7, 0], sizes = [1, 64], strides = [1, 1]} : vector<8x64xf32> to vector<1x64xf32>
    %518 = vector.extract_strided_slice %68 {offsets = [0, 16], sizes = [8, 1], strides = [1, 1]} : vector<8x128xf32> to vector<8x1xf32>
    %519 = vector.broadcast %518 : vector<8x1xf32> to vector<8x64xf32>
    %520 = arith.mulf %516, %519 : vector<8x64xf32>
    %521 = arith.addf %460, %520 : vector<8x64xf32>
    %522 = vector.extract_strided_slice %91 {offsets = [7, 0], sizes = [1, 64], strides = [1, 1]} : vector<8x64xf32> to vector<1x64xf32>
    %523 = vector.broadcast %522 : vector<1x64xf32> to vector<8x64xf32>
    %524 = arith.mulf %87, %523 : vector<8x64xf32>
    %525 = math.exp %524 : vector<8x64xf32>
    %526 = vector.extract_strided_slice %68 {offsets = [0, 9], sizes = [8, 1], strides = [1, 1]} : vector<8x128xf32> to vector<8x1xf32>
    %527 = vector.broadcast %526 : vector<8x1xf32> to vector<8x64xf32>
    %528 = arith.mulf %92, %527 : vector<8x64xf32>
    %c1_i32_144 = arith.constant 1 : i32
    %529 = vector.broadcast %c1_i32_144 : i32 to vector<8x1xi32>
    %530 = arith.cmpi slt, %5, %529 : vector<8x1xi32>
    %c1_i32_145 = arith.constant 1 : i32
    %531 = tpu.dynamic_rotate %525 by %c1_i32_145 dim 0 : vector<8x64xf32>, i32 -> vector<8x64xf32>
    %cst_146 = arith.constant 1.000000e+00 : f32
    %532 = vector.shape_cast %530 : vector<8x1xi1> to vector<8x1xi1>
    %533 = vector.broadcast %532 : vector<8x1xi1> to vector<8x64xi1>
    %534 = vector.broadcast %cst_146 : f32 to vector<8x64xf32>
    %535 = arith.select %533, %534, %531 : vector<8x64xi1>, vector<8x64xf32>
    %c1_i32_147 = arith.constant 1 : i32
    %536 = tpu.dynamic_rotate %528 by %c1_i32_147 dim 0 : vector<8x64xf32>, i32 -> vector<8x64xf32>
    %cst_148 = arith.constant 0.000000e+00 : f32
    %537 = vector.shape_cast %530 : vector<8x1xi1> to vector<8x1xi1>
    %538 = vector.broadcast %537 : vector<8x1xi1> to vector<8x64xi1>
    %539 = vector.broadcast %cst_148 : f32 to vector<8x64xf32>
    %540 = arith.select %538, %539, %536 : vector<8x64xi1>, vector<8x64xf32>
    %541 = arith.mulf %525, %540 : vector<8x64xf32>
    %542 = arith.addf %528, %541 : vector<8x64xf32>
    %543 = arith.mulf %525, %535 : vector<8x64xf32>
    %c2_i32_149 = arith.constant 2 : i32
    %544 = vector.broadcast %c2_i32_149 : i32 to vector<8x1xi32>
    %545 = arith.cmpi slt, %5, %544 : vector<8x1xi32>
    %c2_i32_150 = arith.constant 2 : i32
    %546 = tpu.dynamic_rotate %543 by %c2_i32_150 dim 0 : vector<8x64xf32>, i32 -> vector<8x64xf32>
    %cst_151 = arith.constant 1.000000e+00 : f32
    %547 = vector.shape_cast %545 : vector<8x1xi1> to vector<8x1xi1>
    %548 = vector.broadcast %547 : vector<8x1xi1> to vector<8x64xi1>
    %549 = vector.broadcast %cst_151 : f32 to vector<8x64xf32>
    %550 = arith.select %548, %549, %546 : vector<8x64xi1>, vector<8x64xf32>
    %c2_i32_152 = arith.constant 2 : i32
    %551 = tpu.dynamic_rotate %542 by %c2_i32_152 dim 0 : vector<8x64xf32>, i32 -> vector<8x64xf32>
    %cst_153 = arith.constant 0.000000e+00 : f32
    %552 = vector.shape_cast %545 : vector<8x1xi1> to vector<8x1xi1>
    %553 = vector.broadcast %552 : vector<8x1xi1> to vector<8x64xi1>
    %554 = vector.broadcast %cst_153 : f32 to vector<8x64xf32>
    %555 = arith.select %553, %554, %551 : vector<8x64xi1>, vector<8x64xf32>
    %556 = arith.mulf %543, %555 : vector<8x64xf32>
    %557 = arith.addf %542, %556 : vector<8x64xf32>
    %558 = arith.mulf %543, %550 : vector<8x64xf32>
    %c4_i32_154 = arith.constant 4 : i32
    %559 = vector.broadcast %c4_i32_154 : i32 to vector<8x1xi32>
    %560 = arith.cmpi slt, %5, %559 : vector<8x1xi32>
    %c4_i32_155 = arith.constant 4 : i32
    %561 = tpu.dynamic_rotate %558 by %c4_i32_155 dim 0 : vector<8x64xf32>, i32 -> vector<8x64xf32>
    %cst_156 = arith.constant 1.000000e+00 : f32
    %562 = vector.shape_cast %560 : vector<8x1xi1> to vector<8x1xi1>
    %563 = vector.broadcast %562 : vector<8x1xi1> to vector<8x64xi1>
    %564 = vector.broadcast %cst_156 : f32 to vector<8x64xf32>
    %565 = arith.select %563, %564, %561 : vector<8x64xi1>, vector<8x64xf32>
    %c4_i32_157 = arith.constant 4 : i32
    %566 = tpu.dynamic_rotate %557 by %c4_i32_157 dim 0 : vector<8x64xf32>, i32 -> vector<8x64xf32>
    %cst_158 = arith.constant 0.000000e+00 : f32
    %567 = vector.shape_cast %560 : vector<8x1xi1> to vector<8x1xi1>
    %568 = vector.broadcast %567 : vector<8x1xi1> to vector<8x64xi1>
    %569 = vector.broadcast %cst_158 : f32 to vector<8x64xf32>
    %570 = arith.select %568, %569, %566 : vector<8x64xi1>, vector<8x64xf32>
    %571 = arith.mulf %558, %570 : vector<8x64xf32>
    %572 = arith.addf %557, %571 : vector<8x64xf32>
    %573 = arith.mulf %558, %565 : vector<8x64xf32>
    %574 = vector.extract_strided_slice %93 {offsets = [7, 0], sizes = [1, 64], strides = [1, 1]} : vector<8x64xf32> to vector<1x64xf32>
    %575 = vector.broadcast %574 : vector<1x64xf32> to vector<8x64xf32>
    %576 = arith.mulf %573, %575 : vector<8x64xf32>
    %577 = arith.addf %576, %572 : vector<8x64xf32>
    %578 = vector.extract_strided_slice %577 {offsets = [7, 0], sizes = [1, 64], strides = [1, 1]} : vector<8x64xf32> to vector<1x64xf32>
    %579 = vector.extract_strided_slice %68 {offsets = [0, 17], sizes = [8, 1], strides = [1, 1]} : vector<8x128xf32> to vector<8x1xf32>
    %580 = vector.broadcast %579 : vector<8x1xf32> to vector<8x64xf32>
    %581 = arith.mulf %577, %580 : vector<8x64xf32>
    %582 = arith.addf %521, %581 : vector<8x64xf32>
    %583 = tpu.concatenate %151, %212, %273, %334, %395, %456, %517, %578 in 0 : vector<1x64xf32>, vector<1x64xf32>, vector<1x64xf32>, vector<1x64xf32>, vector<1x64xf32>, vector<1x64xf32>, vector<1x64xf32>, vector<1x64xf32> -> vector<8x64xf32>
    %c0_159 = arith.constant 0 : index
    %c0_160 = arith.constant 0 : index
    %584 = vector.load %arg15[%c0_159, %c0_160] : memref<8x64xf32, #tpu.memory_space<vmem>>, vector<8x64xf32>
    tpu.vector_store %arg15[%c0_159, %c0_160], %583 {strides = array<i32>} : memref<8x64xf32, #tpu.memory_space<vmem>>, vector<8x64xf32>,
    %c0_161 = arith.constant 0 : index
    %c0_162 = arith.constant 0 : index
    %585 = vector.load %arg10[%c0_161, %c0_162] : memref<1x64xf32, #tpu.memory_space<vmem>>, vector<1x64xf32>
    %586 = vector.broadcast %585 : vector<1x64xf32> to vector<8x64xf32>
    %587 = arith.mulf %66, %586 : vector<8x64xf32>
    %588 = arith.addf %582, %587 : vector<8x64xf32>
    %589 = arith.negf %9 : vector<8x64xf32>
    %590 = math.exp %589 : vector<8x64xf32>
    %cst_163 = arith.constant 1.000000e+00 : f32
    %591 = vector.broadcast %cst_163 : f32 to vector<8x64xf32>
    %592 = arith.addf %591, %590 : vector<8x64xf32>
    %593 = arith.divf %591, %592 : vector<8x64xf32>
    %594 = arith.mulf %9, %593 : vector<8x64xf32>
    %595 = arith.mulf %588, %594 : vector<8x64xf32>
    %c0_164 = arith.constant 0 : index
    %c0_165 = arith.constant 0 : index
    %596 = vector.load %arg11[%c0_164, %c0_165] : memref<64x32xf32, #tpu.memory_space<vmem>>, vector<64x32xf32>
    %cst_166 = arith.constant dense<0.000000e+00> : vector<8x32xf32>
    %597 = tpu.matmul %595, %596, %cst_166 {dimension_numbers = #tpu.dot_dimension_numbers<[1], [0], [0], [1], [0, 0, 1, 1], [], []>} : vector<8x64xf32>, vector<64x32xf32>, vector<8x32xf32> -> vector<8x32xf32>
    %598 = arith.addf %597, %4 : vector<8x32xf32>
    %cst_167 = arith.constant dense<0.000000e+00> : vector<8xf32>
    %599 = vector.multi_reduction <add>, %598, %cst_167 [1] : vector<8x32xf32> to vector<8xf32>
    %600 = vector.shape_cast %599 : vector<8xf32> to vector<8x1xf32>
    %cst_168 = arith.constant 3.200000e+01 : f32
    %601 = vector.broadcast %cst_168 : f32 to vector<8x1xf32>
    %602 = arith.divf %600, %601 : vector<8x1xf32>
    %603 = vector.broadcast %602 : vector<8x1xf32> to vector<8x32xf32>
    %604 = arith.subf %598, %603 : vector<8x32xf32>
    %605 = arith.mulf %604, %604 : vector<8x32xf32>
    %cst_169 = arith.constant dense<0.000000e+00> : vector<8xf32>
    %606 = vector.multi_reduction <add>, %605, %cst_169 [1] : vector<8x32xf32> to vector<8xf32>
    %607 = vector.shape_cast %606 : vector<8xf32> to vector<8x1xf32>
    %cst_170 = arith.constant 3.200000e+01 : f32
    %608 = vector.broadcast %cst_170 : f32 to vector<8x1xf32>
    %609 = arith.divf %607, %608 : vector<8x1xf32>
    %610 = vector.broadcast %602 : vector<8x1xf32> to vector<8x32xf32>
    %611 = arith.subf %598, %610 : vector<8x32xf32>
    %cst_171 = arith.constant 9.99999974E-6 : f32
    %612 = vector.broadcast %cst_171 : f32 to vector<8x1xf32>
    %613 = arith.addf %609, %612 : vector<8x1xf32>
    %614 = math.rsqrt %613 : vector<8x1xf32>
    %615 = vector.broadcast %614 : vector<8x1xf32> to vector<8x32xf32>
    %616 = arith.mulf %611, %615 : vector<8x32xf32>
    %c0_172 = arith.constant 0 : index
    %c0_173 = arith.constant 0 : index
    %617 = vector.load %arg12[%c0_172, %c0_173] : memref<1x32xf32, #tpu.memory_space<vmem>>, vector<1x32xf32>
    %618 = vector.broadcast %617 : vector<1x32xf32> to vector<8x32xf32>
    %619 = arith.mulf %616, %618 : vector<8x32xf32>
    %c0_174 = arith.constant 0 : index
    %c0_175 = arith.constant 0 : index
    %620 = vector.load %arg13[%c0_174, %c0_175] : memref<1x32xf32, #tpu.memory_space<vmem>>, vector<1x32xf32>
    %621 = vector.broadcast %620 : vector<1x32xf32> to vector<8x32xf32>
    %622 = arith.addf %619, %621 : vector<8x32xf32>
    %c0_176 = arith.constant 0 : index
    %c0_177 = arith.constant 0 : index
    %c0_178 = arith.constant 0 : index
    %623 = vector.load %arg14[%c0_176, %c0_177, %c0_178] : memref<1x8x32xf32, #tpu.memory_space<vmem>>, vector<1x8x32xf32>
    %624 = vector.shape_cast %623 : vector<1x8x32xf32> to vector<8x32xf32>
    %625 = vector.shape_cast %622 : vector<8x32xf32> to vector<1x8x32xf32>
    tpu.vector_store %arg14[%c0_176, %c0_177, %c0_178], %625 {strides = array<i32>} : memref<1x8x32xf32, #tpu.memory_space<vmem>>, vector<1x8x32xf32>,
    return
  }
  func.func @transform_0(%arg0: i32, %arg1: i32) -> (i32, i32, i32) {
    %c0_i32 = arith.constant 0 : i32
    %c0_i32_0 = arith.constant 0 : i32
    return %arg0, %arg1, %c0_i32 : i32, i32, i32
  }
  func.func @transform_1(%arg0: i32, %arg1: i32) -> (i32, i32) {
    %c0_i32 = arith.constant 0 : i32
    %c0_i32_0 = arith.constant 0 : i32
    %c0_i32_1 = arith.constant 0 : i32
    return %c0_i32, %c0_i32_0 : i32, i32
  }
  func.func @transform_2(%arg0: i32, %arg1: i32) -> (i32, i32) {
    %c0_i32 = arith.constant 0 : i32
    %c0_i32_0 = arith.constant 0 : i32
    %c0_i32_1 = arith.constant 0 : i32
    return %c0_i32, %c0_i32_0 : i32, i32
  }
  func.func @transform_3(%arg0: i32, %arg1: i32) -> (i32, i32) {
    %c0_i32 = arith.constant 0 : i32
    %c0_i32_0 = arith.constant 0 : i32
    %c0_i32_1 = arith.constant 0 : i32
    return %c0_i32, %c0_i32_0 : i32, i32
  }
  func.func @transform_4(%arg0: i32, %arg1: i32) -> (i32, i32) {
    %c0_i32 = arith.constant 0 : i32
    %c0_i32_0 = arith.constant 0 : i32
    %c0_i32_1 = arith.constant 0 : i32
    return %c0_i32, %c0_i32_0 : i32, i32
  }
  func.func @transform_5(%arg0: i32, %arg1: i32) -> (i32, i32) {
    %c0_i32 = arith.constant 0 : i32
    %c0_i32_0 = arith.constant 0 : i32
    %c0_i32_1 = arith.constant 0 : i32
    return %c0_i32, %c0_i32_0 : i32, i32
  }
  func.func @transform_6(%arg0: i32, %arg1: i32) -> (i32, i32) {
    %c0_i32 = arith.constant 0 : i32
    %c0_i32_0 = arith.constant 0 : i32
    %c0_i32_1 = arith.constant 0 : i32
    return %c0_i32, %c0_i32_0 : i32, i32
  }
  func.func @transform_7(%arg0: i32, %arg1: i32) -> (i32, i32) {
    %c0_i32 = arith.constant 0 : i32
    %c0_i32_0 = arith.constant 0 : i32
    %c0_i32_1 = arith.constant 0 : i32
    return %c0_i32, %c0_i32_0 : i32, i32
  }
  func.func @transform_8(%arg0: i32, %arg1: i32) -> (i32, i32) {
    %c0_i32 = arith.constant 0 : i32
    %c0_i32_0 = arith.constant 0 : i32
    %c0_i32_1 = arith.constant 0 : i32
    return %c0_i32, %c0_i32_0 : i32, i32
  }
  func.func @transform_9(%arg0: i32, %arg1: i32) -> (i32, i32) {
    %c0_i32 = arith.constant 0 : i32
    %c0_i32_0 = arith.constant 0 : i32
    %c0_i32_1 = arith.constant 0 : i32
    return %c0_i32, %c0_i32_0 : i32, i32
  }
  func.func @transform_10(%arg0: i32, %arg1: i32) -> (i32, i32) {
    %c0_i32 = arith.constant 0 : i32
    %c0_i32_0 = arith.constant 0 : i32
    %c0_i32_1 = arith.constant 0 : i32
    return %c0_i32, %c0_i32_0 : i32, i32
  }
  func.func @transform_11(%arg0: i32, %arg1: i32) -> (i32, i32) {
    %c0_i32 = arith.constant 0 : i32
    %c0_i32_0 = arith.constant 0 : i32
    %c0_i32_1 = arith.constant 0 : i32
    return %c0_i32, %c0_i32_0 : i32, i32
  }
  func.func @transform_12(%arg0: i32, %arg1: i32) -> (i32, i32, i32) {
    %c0_i32 = arith.constant 0 : i32
    %c0_i32_0 = arith.constant 0 : i32
    return %arg0, %arg1, %c0_i32 : i32, i32, i32
  }
}

</mosaic_0001>

<llo_original>
// kernel: tpu_custom_call.1
$region0: #{tpu_custom_call.1}
  #allocation0 [shape = 'u32[]', space=smem, size = 0x4, offset = 0x4, fixed_abs, tag = 'smem constant byte address 0x4 - core index']
  #allocation1 [shape = 'u32[144,128]{1,0:T(1,128)}', space=vmem, size = 0x12000, scoped, tag = 'internal scratch']
  #allocation2 [shape = 'f32[8,64]{1,0:T(8,128)}', space=vmem, size = 0x1000, scoped, tag = 'scratch operand']
  #allocation3 [shape = 'f32[8,64]{1,0:T(8,128)}', space=vmem, size = 0x1000, scoped, tag = 'scratch operand']
  %s0 = inlined_call_operand.vmem [shape: f32[2,8,32], index: 0, kind: input, shape index: {}]
  %s1 = inlined_call_operand.vmem [shape: f32[32,128], index: 1, kind: input, shape index: {}]
  %s2 = inlined_call_operand.vmem [shape: f32[4,64], index: 2, kind: input, shape index: {}]
  %s3 = inlined_call_operand.vmem [shape: f32[1,64], index: 3, kind: input, shape index: {}]
  %s4 = inlined_call_operand.vmem [shape: f32[64,128], index: 4, kind: input, shape index: {}]
  %s5 = inlined_call_operand.vmem [shape: f32[128,64], index: 5, kind: input, shape index: {}]
  %s6 = inlined_call_operand.vmem [shape: f32[1,64], index: 6, kind: input, shape index: {}]
  %s7 = inlined_call_operand.vmem [shape: f32[8,64], index: 7, kind: input, shape index: {}]
  %s8 = inlined_call_operand.vmem [shape: f32[1,64], index: 8, kind: input, shape index: {}]
  %s9 = inlined_call_operand.vmem [shape: f32[64,32], index: 9, kind: input, shape index: {}]
  %s10 = inlined_call_operand.vmem [shape: f32[1,32], index: 10, kind: input, shape index: {}]
  %s11 = inlined_call_operand.vmem [shape: f32[1,32], index: 11, kind: input, shape index: {}]
  %s12 = inlined_call_operand.hbm [shape: f32[2,8,32], index: 12, kind: output, shape index: {}]
  %s13 = sld [smem:[#allocation0]]
  $region85: #{tpu_custom_call.1} parent=0
    _
  %s15 = ssub.s32 1, %s13
  %s16 = scalar_select 0, %s15, %s13
  $region1: #{tpu_custom_call.1} parent=0
    #allocation4 [shape = 'u8[8192]{0}', space=vmem, size = 0x2000, scoped, tag = 'output window, operand 0']
    #allocation5 [shape = 's32[2]{0}', space=sflag, size = 0x8, scoped, tag = 'scoped memory for tpu_custom_call.1']
    %17 = vsyncpa [#allocation5], 0
    %s18 = scalar_lea.sflag [#allocation5], 1
    %19 = vsyncpa %s18, 0
    loop: start=0, step=1, limit=4
    $region2: #{tpu_custom_call.1} parent=1 // loop_pre_header
      _
    $region3: #{tpu_custom_call.1} parent=1 // loop_header
      %s21 = sphi 0, %s25
      %p22 = scmp.ge.s32.totalorder %s21, 4
      %s28 = sphi 0, %s40
      %s29 = sphi 0, %s36
      %s30 = sphi 0, %s28
      %s31 = sphi 0, %s29
      %s32 = sphi 0, %s30
      %s33 = sphi 0, %s31
      %s45 = sphi 0, %s47
      %s48 = sphi 0, %s45
      %s49 = sphi 0, %s48
      %s65 = sphi 0, %s49
      %s69 = sphi 0, %s69
      %s71 = sphi 0, %s69
      %s72 = sphi 0, %s71
      %s86 = sphi 0, %s72
      %s90 = sphi 0, %s90
      %s92 = sphi 0, %s90
      %s93 = sphi 0, %s92
      %s107 = sphi 0, %s93
      %s111 = sphi 0, %s111
      %s113 = sphi 0, %s111
      %s114 = sphi 0, %s113
      %s128 = sphi 0, %s114
      %s132 = sphi 0, %s132
      %s134 = sphi 0, %s132
      %s135 = sphi 0, %s134
      %s149 = sphi 0, %s135
      %s153 = sphi 0, %s153
      %s155 = sphi 0, %s153
      %s156 = sphi 0, %s155
      %s170 = sphi 0, %s156
      %s174 = sphi 0, %s174
      %s176 = sphi 0, %s174
      %s177 = sphi 0, %s176
      %s191 = sphi 0, %s177
      %s195 = sphi 0, %s195
      %s197 = sphi 0, %s195
      %s198 = sphi 0, %s197
      %s212 = sphi 0, %s198
      %s216 = sphi 0, %s216
      %s218 = sphi 0, %s216
      %s219 = sphi 0, %s218
      %s233 = sphi 0, %s219
      %s237 = sphi 0, %s237
      %s239 = sphi 0, %s237
      %s240 = sphi 0, %s239
      %s254 = sphi 0, %s240
      %s258 = sphi 0, %s258
      %s260 = sphi 0, %s258
      %s261 = sphi 0, %s260
      %s275 = sphi 0, %s261
      %s279 = sphi 0, %s279
      %s281 = sphi 0, %s279
      %s282 = sphi 0, %s281
      %s296 = sphi 0, %s282
      %s304 = sphi 0, %s306
      %s307 = sphi 0, %s304
      %s308 = sphi 0, %s307
      %s324 = sphi 0, %s308
    $region4: #{tpu_custom_call.1} parent=1 // loop_header_branch
      %24 = sbr.rel (%p22) target = $region8
    $region5: #{tpu_custom_call.1} parent=1 // loop_body
      %s26 = ssub.s32 %s21, 1
      %s27 = ssub.s32 %s21, 2
      %s34 = sadd.s32 1, %s29
      %p35 = scmp.ge.s32.totalorder %s34, 1
      %s36 = scalar_select %p35, 0, %s34
      %s37 = sadd.s32 1, %s28
      %s38 = scalar_select %p35, %s37, %s28
      %p39 = scmp.ge.s32.totalorder %s38, 2
      %s40 = scalar_select %p39, 0, %s38
      %s41 = ssub.s32 %s28, %s40
      %s42 = ssub.s32 %s29, %s36
      %s43 = sor.u32 %s41, %s42
      %p44 = scmp.eq.s32.totalorder %s43, 0
      %s46 = sadd.s32 %s45, 1
      %s47 = scalar_select %p44, %s45, %s46
      %p50 = pneg %p44
      %p51 = scmp.eq.s32.totalorder %s21, 1
      %p52 = por %p50, %p51
      %p53 = scmp.ne.s32.totalorder %s45, %s48
      %p54 = scmp.eq.s32.totalorder %s21, 0
      %p55 = por %p53, %p54
      %p56 = scmp.ne.s32.totalorder %s45, %s48
      %p57 = scmp.eq.s32.totalorder %s26, 1
      %p58 = por %p56, %p57
      %p59 = scmp.ne.s32.totalorder %s48, %s49
      %p60 = scmp.eq.s32.totalorder %s26, 0
      %p61 = por %p59, %p60
      %p62 = scmp.ne.s32.totalorder %s48, %s49
      %p63 = scmp.eq.s32.totalorder %s27, 1
      %p64 = por %p62, %p63
      %p66 = scmp.ne.s32.totalorder %s49, %s65
      %p67 = scmp.eq.s32.totalorder %s27, 0
      %p68 = por %p66, %p67
      %s70 = sadd.s32 %s69, 1
      %p73 = scmp.eq.s32.totalorder %s21, 1
      %p74 = scmp.ne.s32.totalorder %s69, %s71
      %p75 = scmp.eq.s32.totalorder %s21, 0
      %p76 = por %p74, %p75
      %p77 = scmp.ne.s32.totalorder %s69, %s71
      %p78 = scmp.eq.s32.totalorder %s26, 1
      %p79 = por %p77, %p78
      %p80 = scmp.ne.s32.totalorder %s71, %s72
      %p81 = scmp.eq.s32.totalorder %s26, 0
      %p82 = por %p80, %p81
      %p83 = scmp.ne.s32.totalorder %s71, %s72
      %p84 = scmp.eq.s32.totalorder %s27, 1
      %p85 = por %p83, %p84
      %p87 = scmp.ne.s32.totalorder %s72, %s86
      %p88 = scmp.eq.s32.totalorder %s27, 0
      %p89 = por %p87, %p88
      %s91 = sadd.s32 %s90, 1
      %p94 = scmp.eq.s32.totalorder %s21, 1
      %p95 = scmp.ne.s32.totalorder %s90, %s92
      %p96 = scmp.eq.s32.totalorder %s21, 0
      %p97 = por %p95, %p96
      %p98 = scmp.ne.s32.totalorder %s90, %s92
      %p99 = scmp.eq.s32.totalorder %s26, 1
      %p100 = por %p98, %p99
      %p101 = scmp.ne.s32.totalorder %s92, %s93
      %p102 = scmp.eq.s32.totalorder %s26, 0
      %p103 = por %p101, %p102
      %p104 = scmp.ne.s32.totalorder %s92, %s93
      %p105 = scmp.eq.s32.totalorder %s27, 1
      %p106 = por %p104, %p105
      %p108 = scmp.ne.s32.totalorder %s93, %s107
      %p109 = scmp.eq.s32.totalorder %s27, 0
      %p110 = por %p108, %p109
      %s112 = sadd.s32 %s111, 1
      %p115 = scmp.eq.s32.totalorder %s21, 1
      %p116 = scmp.ne.s32.totalorder %s111, %s113
      %p117 = scmp.eq.s32.totalorder %s21, 0
      %p118 = por %p116, %p117
      %p119 = scmp.ne.s32.totalorder %s111, %s113
      %p120 = scmp.eq.s32.totalorder %s26, 1
      %p121 = por %p119, %p120
      %p122 = scmp.ne.s32.totalorder %s113, %s114
      %p123 = scmp.eq.s32.totalorder %s26, 0
      %p124 = por %p122, %p123
      %p125 = scmp.ne.s32.totalorder %s113, %s114
      %p126 = scmp.eq.s32.totalorder %s27, 1
      %p127 = por %p125, %p126
      %p129 = scmp.ne.s32.totalorder %s114, %s128
      %p130 = scmp.eq.s32.totalorder %s27, 0
      %p131 = por %p129, %p130
      %s133 = sadd.s32 %s132, 1
      %p136 = scmp.eq.s32.totalorder %s21, 1
      %p137 = scmp.ne.s32.totalorder %s132, %s134
      %p138 = scmp.eq.s32.totalorder %s21, 0
      %p139 = por %p137, %p138
      %p140 = scmp.ne.s32.totalorder %s132, %s134
      %p141 = scmp.eq.s32.totalorder %s26, 1
      %p142 = por %p140, %p141
      %p143 = scmp.ne.s32.totalorder %s134, %s135
      %p144 = scmp.eq.s32.totalorder %s26, 0
      %p145 = por %p143, %p144
      %p146 = scmp.ne.s32.totalorder %s134, %s135
      %p147 = scmp.eq.s32.totalorder %s27, 1
      %p148 = por %p146, %p147
      %p150 = scmp.ne.s32.totalorder %s135, %s149
      %p151 = scmp.eq.s32.totalorder %s27, 0
      %p152 = por %p150, %p151
      %s154 = sadd.s32 %s153, 1
      %p157 = scmp.eq.s32.totalorder %s21, 1
      %p158 = scmp.ne.s32.totalorder %s153, %s155
      %p159 = scmp.eq.s32.totalorder %s21, 0
      %p160 = por %p158, %p159
      %p161 = scmp.ne.s32.totalorder %s153, %s155
      %p162 = scmp.eq.s32.totalorder %s26, 1
      %p163 = por %p161, %p162
      %p164 = scmp.ne.s32.totalorder %s155, %s156
      %p165 = scmp.eq.s32.totalorder %s26, 0
      %p166 = por %p164, %p165
      %p167 = scmp.ne.s32.totalorder %s155, %s156
      %p168 = scmp.eq.s32.totalorder %s27, 1
      %p169 = por %p167, %p168
      %p171 = scmp.ne.s32.totalorder %s156, %s170
      %p172 = scmp.eq.s32.totalorder %s27, 0
      %p173 = por %p171, %p172
      %s175 = sadd.s32 %s174, 1
      %p178 = scmp.eq.s32.totalorder %s21, 1
      %p179 = scmp.ne.s32.totalorder %s174, %s176
      %p180 = scmp.eq.s32.totalorder %s21, 0
      %p181 = por %p179, %p180
      %p182 = scmp.ne.s32.totalorder %s174, %s176
      %p183 = scmp.eq.s32.totalorder %s26, 1
      %p184 = por %p182, %p183
      %p185 = scmp.ne.s32.totalorder %s176, %s177
      %p186 = scmp.eq.s32.totalorder %s26, 0
      %p187 = por %p185, %p186
      %p188 = scmp.ne.s32.totalorder %s176, %s177
      %p189 = scmp.eq.s32.totalorder %s27, 1
      %p190 = por %p188, %p189
      %p192 = scmp.ne.s32.totalorder %s177, %s191
      %p193 = scmp.eq.s32.totalorder %s27, 0
      %p194 = por %p192, %p193
      %s196 = sadd.s32 %s195, 1
      %p199 = scmp.eq.s32.totalorder %s21, 1
      %p200 = scmp.ne.s32.totalorder %s195, %s197
      %p201 = scmp.eq.s32.totalorder %s21, 0
      %p202 = por %p200, %p201
      %p203 = scmp.ne.s32.totalorder %s195, %s197
      %p204 = scmp.eq.s32.totalorder %s26, 1
      %p205 = por %p203, %p204
      %p206 = scmp.ne.s32.totalorder %s197, %s198
      %p207 = scmp.eq.s32.totalorder %s26, 0
      %p208 = por %p206, %p207
      %p209 = scmp.ne.s32.totalorder %s197, %s198
      %p210 = scmp.eq.s32.totalorder %s27, 1
      %p211 = por %p209, %p210
      %p213 = scmp.ne.s32.totalorder %s198, %s212
      %p214 = scmp.eq.s32.totalorder %s27, 0
      %p215 = por %p213, %p214
      %s217 = sadd.s32 %s216, 1
      %p220 = scmp.eq.s32.totalorder %s21, 1
      %p221 = scmp.ne.s32.totalorder %s216, %s218
      %p222 = scmp.eq.s32.totalorder %s21, 0
      %p223 = por %p221, %p222
      %p224 = scmp.ne.s32.totalorder %s216, %s218
      %p225 = scmp.eq.s32.totalorder %s26, 1
      %p226 = por %p224, %p225
      %p227 = scmp.ne.s32.totalorder %s218, %s219
      %p228 = scmp.eq.s32.totalorder %s26, 0
      %p229 = por %p227, %p228
      %p230 = scmp.ne.s32.totalorder %s218, %s219
      %p231 = scmp.eq.s32.totalorder %s27, 1
      %p232 = por %p230, %p231
      %p234 = scmp.ne.s32.totalorder %s219, %s233
      %p235 = scmp.eq.s32.totalorder %s27, 0
      %p236 = por %p234, %p235
      %s238 = sadd.s32 %s237, 1
      %p241 = scmp.eq.s32.totalorder %s21, 1
      %p242 = scmp.ne.s32.totalorder %s237, %s239
      %p243 = scmp.eq.s32.totalorder %s21, 0
      %p244 = por %p242, %p243
      %p245 = scmp.ne.s32.totalorder %s237, %s239
      %p246 = scmp.eq.s32.totalorder %s26, 1
      %p247 = por %p245, %p246
      %p248 = scmp.ne.s32.totalorder %s239, %s240
      %p249 = scmp.eq.s32.totalorder %s26, 0
      %p250 = por %p248, %p249
      %p251 = scmp.ne.s32.totalorder %s239, %s240
      %p252 = scmp.eq.s32.totalorder %s27, 1
      %p253 = por %p251, %p252
      %p255 = scmp.ne.s32.totalorder %s240, %s254
      %p256 = scmp.eq.s32.totalorder %s27, 0
      %p257 = por %p255, %p256
      %s259 = sadd.s32 %s258, 1
      %p262 = scmp.eq.s32.totalorder %s21, 1
      %p263 = scmp.ne.s32.totalorder %s258, %s260
      %p264 = scmp.eq.s32.totalorder %s21, 0
      %p265 = por %p263, %p264
      %p266 = scmp.ne.s32.totalorder %s258, %s260
      %p267 = scmp.eq.s32.totalorder %s26, 1
      %p268 = por %p266, %p267
      %p269 = scmp.ne.s32.totalorder %s260, %s261
      %p270 = scmp.eq.s32.totalorder %s26, 0
      %p271 = por %p269, %p270
      %p272 = scmp.ne.s32.totalorder %s260, %s261
      %p273 = scmp.eq.s32.totalorder %s27, 1
      %p274 = por %p272, %p273
      %p276 = scmp.ne.s32.totalorder %s261, %s275
      %p277 = scmp.eq.s32.totalorder %s27, 0
      %p278 = por %p276, %p277
      %s280 = sadd.s32 %s279, 1
      %p283 = scmp.eq.s32.totalorder %s21, 1
      %p284 = scmp.ne.s32.totalorder %s279, %s281
      %p285 = scmp.eq.s32.totalorder %s21, 0
      %p286 = por %p284, %p285
      %p287 = scmp.ne.s32.totalorder %s279, %s281
      %p288 = scmp.eq.s32.totalorder %s26, 1
      %p289 = por %p287, %p288
      %p290 = scmp.ne.s32.totalorder %s281, %s282
      %p291 = scmp.eq.s32.totalorder %s26, 0
      %p292 = por %p290, %p291
      %p293 = scmp.ne.s32.totalorder %s281, %s282
      %p294 = scmp.eq.s32.totalorder %s27, 1
      %p295 = por %p293, %p294
      %p297 = scmp.ne.s32.totalorder %s282, %s296
      %p298 = scmp.eq.s32.totalorder %s27, 0
      %p299 = por %p297, %p298
      %s300 = ssub.s32 %s28, %s40
      %s301 = ssub.s32 %s29, %s36
      %s302 = sor.u32 %s300, %s301
      %p303 = scmp.eq.s32.totalorder %s302, 0
      %s305 = sadd.s32 %s304, 1
      %s306 = scalar_select %p303, %s304, %s305
      %p309 = pneg %p303
      %p310 = scmp.eq.s32.totalorder %s21, 1
      %p311 = por %p309, %p310
      %p312 = scmp.ne.s32.totalorder %s304, %s307
      %p313 = scmp.eq.s32.totalorder %s21, 0
      %p314 = por %p312, %p313
      %p315 = scmp.ne.s32.totalorder %s304, %s307
      %p316 = scmp.eq.s32.totalorder %s26, 1
      %p317 = por %p315, %p316
      %p318 = scmp.ne.s32.totalorder %s307, %s308
      %p319 = scmp.eq.s32.totalorder %s26, 0
      %p320 = por %p318, %p319
      %p321 = scmp.ne.s32.totalorder %s307, %s308
      %p322 = scmp.eq.s32.totalorder %s27, 1
      %p323 = por %p321, %p322
      %p325 = scmp.ne.s32.totalorder %s308, %s324
      %p326 = scmp.eq.s32.totalorder %s27, 0
      %p327 = por %p325, %p326
      %p328 = scmp.le.s32.totalorder 1, %s21
      %p329 = scmp.lt.s32.totalorder %s21, 3
      %p330 = pnand %p328, %p329
      %p331 = pneg %p330
      // Predicated region
      $region9: #{tpu_custom_call.1} parent=5 // pred_check
        _
      $region10: #{tpu_custom_call.1} parent=5 // pred_check_branch
        %333 = sbr.rel (%p330) target = $region12
      $region11: #{tpu_custom_call.1} parent=5 // pred_region
        %s334 = ssub.s32 %s21, 1
        // Predicated region
        $region13: #{tpu_custom_call.1} parent=11 // pred_check
          %p335 = pneg %p82
        $region14: #{tpu_custom_call.1} parent=11 // pred_check_branch
          %337 = sbr.rel (%p335) target = $region16
        $region15: #{tpu_custom_call.1} parent=11 // pred_region
          _
        $region16: #{tpu_custom_call.1} parent=11 // pred_fallthru
          _
        // Predicated region
        $region17: #{tpu_custom_call.1} parent=11 // pred_check
          %p338 = pneg %p103
        $region18: #{tpu_custom_call.1} parent=11 // pred_check_branch
          %340 = sbr.rel (%p338) target = $region20
        $region19: #{tpu_custom_call.1} parent=11 // pred_region
          _
        $region20: #{tpu_custom_call.1} parent=11 // pred_fallthru
          _
        // Predicated region
        $region21: #{tpu_custom_call.1} parent=11 // pred_check
          %p341 = pneg %p124
        $region22: #{tpu_custom_call.1} parent=11 // pred_check_branch
          %343 = sbr.rel (%p341) target = $region24
        $region23: #{tpu_custom_call.1} parent=11 // pred_region
          _
        $region24: #{tpu_custom_call.1} parent=11 // pred_fallthru
          _
        // Predicated region
        $region25: #{tpu_custom_call.1} parent=11 // pred_check
          %p344 = pneg %p145
        $region26: #{tpu_custom_call.1} parent=11 // pred_check_branch
          %346 = sbr.rel (%p344) target = $region28
        $region27: #{tpu_custom_call.1} parent=11 // pred_region
          _
        $region28: #{tpu_custom_call.1} parent=11 // pred_fallthru
          _
        // Predicated region
        $region29: #{tpu_custom_call.1} parent=11 // pred_check
          %p347 = pneg %p166
        $region30: #{tpu_custom_call.1} parent=11 // pred_check_branch
          %349 = sbr.rel (%p347) target = $region32
        $region31: #{tpu_custom_call.1} parent=11 // pred_region
          _
        $region32: #{tpu_custom_call.1} parent=11 // pred_fallthru
          _
        // Predicated region
        $region33: #{tpu_custom_call.1} parent=11 // pred_check
          %p350 = pneg %p187
        $region34: #{tpu_custom_call.1} parent=11 // pred_check_branch
          %352 = sbr.rel (%p350) target = $region36
        $region35: #{tpu_custom_call.1} parent=11 // pred_region
          _
        $region36: #{tpu_custom_call.1} parent=11 // pred_fallthru
          _
        // Predicated region
        $region37: #{tpu_custom_call.1} parent=11 // pred_check
          %p353 = pneg %p208
        $region38: #{tpu_custom_call.1} parent=11 // pred_check_branch
          %355 = sbr.rel (%p353) target = $region40
        $region39: #{tpu_custom_call.1} parent=11 // pred_region
          _
        $region40: #{tpu_custom_call.1} parent=11 // pred_fallthru
          _
        // Predicated region
        $region41: #{tpu_custom_call.1} parent=11 // pred_check
          %p356 = pneg %p229
        $region42: #{tpu_custom_call.1} parent=11 // pred_check_branch
          %358 = sbr.rel (%p356) target = $region44
        $region43: #{tpu_custom_call.1} parent=11 // pred_region
          _
        $region44: #{tpu_custom_call.1} parent=11 // pred_fallthru
          _
        // Predicated region
        $region45: #{tpu_custom_call.1} parent=11 // pred_check
          %p359 = pneg %p250
        $region46: #{tpu_custom_call.1} parent=11 // pred_check_branch
          %361 = sbr.rel (%p359) target = $region48
        $region47: #{tpu_custom_call.1} parent=11 // pred_region
          _
        $region48: #{tpu_custom_call.1} parent=11 // pred_fallthru
          _
        // Predicated region
        $region49: #{tpu_custom_call.1} parent=11 // pred_check
          %p362 = pneg %p271
        $region50: #{tpu_custom_call.1} parent=11 // pred_check_branch
          %364 = sbr.rel (%p362) target = $region52
        $region51: #{tpu_custom_call.1} parent=11 // pred_region
          _
        $region52: #{tpu_custom_call.1} parent=11 // pred_fallthru
          _
        // Predicated region
        $region53: #{tpu_custom_call.1} parent=11 // pred_check
          %p365 = pneg %p292
        $region54: #{tpu_custom_call.1} parent=11 // pred_check_branch
          %367 = sbr.rel (%p365) target = $region56
        $region55: #{tpu_custom_call.1} parent=11 // pred_region
          _
        $region56: #{tpu_custom_call.1} parent=11 // pred_fallthru
          _
      $region12: #{tpu_custom_call.1} parent=5 // pred_fallthru
        _
      %p368 = scmp.lt.s32.totalorder %s21, 2
      // Predicated region
      $region57: #{tpu_custom_call.1} parent=5 // pred_check
        %p369 = pneg %p368
      $region58: #{tpu_custom_call.1} parent=5 // pred_check_branch
        %371 = sbr.rel (%p369) target = $region60
      $region59: #{tpu_custom_call.1} parent=5 // pred_region
        // Predicated region
        $region61: #{tpu_custom_call.1} parent=59 // pred_check
          %p372 = pneg %p55
        $region62: #{tpu_custom_call.1} parent=59 // pred_check_branch
          %374 = sbr.rel (%p372) target = $region64
        $region63: #{tpu_custom_call.1} parent=59 // pred_region
          %p375 = scmp.lt.s32.totalorder %s28, 1
          %s376 = scalar_select %p375, %s28, 1
          %p377 = scmp.lt.s32.totalorder %s29, 0
          %s378 = scalar_select %p377, %s29, 0
          %s379 = sadd.s32 %s378, %s376
          %s380 = smul.addr %s379, 8
          %s381 = scalar_lea.vmem %s0, %s380
        $region64: #{tpu_custom_call.1} parent=59 // pred_fallthru
          _
      $region60: #{tpu_custom_call.1} parent=5 // pred_fallthru
        _
      %p382 = scmp.le.s32.totalorder 1, %s21
      %p383 = scmp.lt.s32.totalorder %s21, 3
      %p384 = pnand %p382, %p383
      %p385 = pneg %p384
      // Predicated region
      $region65: #{tpu_custom_call.1} parent=5 // pred_check
        _
      $region66: #{tpu_custom_call.1} parent=5 // pred_check_branch
        %387 = sbr.rel (%p384) target = $region68
      $region67: #{tpu_custom_call.1} parent=5 // pred_region
        %s388 = ssub.s32 %s21, 1
        %p389 = scmp.lt.s32.totalorder %s30, 1
        %s390 = scalar_select %p389, %s30, 1
        %p391 = scmp.lt.s32.totalorder %s31, 0
        %s392 = scalar_select %p391, %s31, 0
        %s393 = sadd.s32 %s392, %s390
        %s394 = smul.addr %s393, 8
        %s395 = scalar_lea.vmem %s0, %s394
        %p396 = pneg %p61
        %p397 = pneg %p58
        %p398 = pneg %p82
        %p399 = pneg %p79
        %p400 = pneg %p103
        %p401 = pneg %p100
        %p402 = pneg %p124
        %p403 = pneg %p121
        %p404 = pneg %p145
        %p405 = pneg %p142
        %p406 = pneg %p166
        %p407 = pneg %p163
        %p408 = pneg %p187
        %p409 = pneg %p184
        %p410 = pneg %p208
        %p411 = pneg %p205
        %p412 = pneg %p229
        %p413 = pneg %p226
        %p414 = pneg %p250
        %p415 = pneg %p247
        %p416 = pneg %p271
        %p417 = pneg %p268
        %p418 = pneg %p292
        %p419 = pneg %p289
        %p420 = pneg %p320
        %p421 = pneg %p317
        %s422 = sand.u32 %s307, 1
        %s423 = scalar_lea.sflag [#allocation5], %s422
        %s424 = sand.u32 %s307, 1
        %s425 = smul.addr %s424, 8
        %s426 = scalar_lea.vmem [#allocation4], %s425
        %p427 = scmp.lt.s32.totalorder %s30, 1
        %s428 = scalar_select %p427, %s30, 1
        %p429 = scmp.lt.s32.totalorder %s31, 0
        %s430 = scalar_select %p429, %s31, 0
        %s431 = sadd.s32 %s430, %s428
        %s432 = smul.addr %s431, 8
        %s433 = scalar_lea.vmem %s0, %s432
        %p434 = scmp.eq.s32.totalorder %s31, 0
        // Predicated region
        $region69: #{tpu_custom_call.1} parent=67 // pred_check
          %p435 = pneg %p434
        $region70: #{tpu_custom_call.1} parent=67 // pred_check_branch
          %437 = sbr.rel (%p435) target = $region72
        $region71: #{tpu_custom_call.1} parent=67 // pred_region
          %vm438 = vcmask 523264
          %439 = vst.msk [vmem:[#allocation2] sm:$0xff] %vm438, 0.0
          %440 = vst.msk [vmem:[#allocation3] sm:$0xff] %vm438, 0.0
        $region72: #{tpu_custom_call.1} parent=67 // pred_fallthru
          _
        %v441 = vld [vmem:[%s433] sm:$0xff]
        %v442 = vlaneseq
        %v443 = vshrl.u32 %v442, 7
        %v444 = vld [vmem:[%s1] sm:$0xff]
        %v445 = vld [vmem:[%s1 + $0x8] sm:$0xff]
        %v446 = vld [vmem:[%s1 + $0x10] sm:$0xff]
        %v447 = vld [vmem:[%s1 + $0x18] sm:$0xff]
        %vm448 = vcmask 261120
        %v450 = vsel %vm448, %v441, 0
        %452 = vmatprep.subr.mxu0 0.0
        %453 = vmatpush1.msra.mxu0 0.0
        %454 = vmatprep.subr.mxu0 0.0
        %455 = vmatpush1.msra.mxu0 0.0
        %456 = vmatprep.subr.mxu0 0.0
        %457 = vmatpush1.msra.mxu0 0.0
        %458 = vmatprep.subr.mxu0 0.0
        %459 = vmatpush1.msra.mxu0 0.0
        %460 = vmatprep.subr.mxu0 0.0
        %461 = vmatpush1.msra.mxu0 0.0
        %462 = vmatprep.subr.mxu0 0.0
        %463 = vmatpush1.msra.mxu0 0.0
        %464 = vmatprep.subr.mxu0 0.0
        %465 = vmatpush1.msra.mxu0 0.0
        %466 = vmatprep.subr.mxu0 0.0
        %467 = vmatpush1.msra.mxu0 0.0
        %468 = vmatprep.subr.mxu0 0.0
        %469 = vmatpush1.msra.mxu0 0.0
        %470 = vmatprep.subr.mxu0 0.0
        %471 = vmatpush1.msra.mxu0 0.0
        %472 = vmatprep.subr.mxu0 0.0
        %473 = vmatpush1.msra.mxu0 0.0
        %474 = vmatprep.subr.mxu0 0.0
        %475 = vmatpush1.msra.mxu0 0.0
        %476 = vmatprep.subr.mxu0 0.0
        %477 = vmatpush1.msra.mxu0 %v447
        %478 = vmatprep.subr.mxu0 0.0
        %479 = vmatpush1.msra.mxu0 %v446
        %480 = vmatprep.subr.mxu0 0.0
        %481 = vmatpush1.msra.mxu0 %v445
        %482 = vmatprep.subr.mxu0 0.0
        %483 = vmatpush1.msra.mxu0 %v444
        %484 = vmatprep.subr.mxu0 0.0
        %485 = vmatpush2.msra.mxu0 0.0
        %486 = vmatprep.subr.mxu0 0.0
        %487 = vmatpush2.msra.mxu0 0.0
        %488 = vmatprep.subr.mxu0 0.0
        %489 = vmatpush2.msra.mxu0 0.0
        %490 = vmatprep.subr.mxu0 0.0
        %491 = vmatpush2.msra.mxu0 0.0
        %492 = vmatprep.subr.mxu0 0.0
        %493 = vmatpush2.msra.mxu0 0.0
        %494 = vmatprep.subr.mxu0 0.0
        %495 = vmatpush2.msra.mxu0 0.0
        %496 = vmatprep.subr.mxu0 0.0
        %497 = vmatpush2.msra.mxu0 0.0
        %498 = vmatprep.subr.mxu0 0.0
        %499 = vmatpush2.msra.mxu0 0.0
        %500 = vmatprep.subr.mxu0 0.0
        %501 = vmatpush2.msra.mxu0 0.0
        %502 = vmatprep.subr.mxu0 0.0
        %503 = vmatpush2.msra.mxu0 0.0
        %504 = vmatprep.subr.mxu0 0.0
        %505 = vmatpush2.msra.mxu0 0.0
        %506 = vmatprep.subr.mxu0 0.0
        %507 = vmatpush2.msra.mxu0 0.0
        %508 = vmatprep.subr.mxu0 0.0
        %509 = vmatpush2.msra.mxu0 0.0
        %510 = vmatprep.subr.mxu0 0.0
        %511 = vmatpush2.msra.mxu0 0.0
        %512 = vmatprep.subr.mxu0 0.0
        %513 = vmatpush2.msra.mxu0 0.0
        %514 = vmatprep.subr.mxu0 0.0
        %515 = vmatpush2.msra.mxu0 0.0
        %516 = vmatprep.mubr.f32.mxu0 0.0
        %517 = vmatmul.mubr.f32.gmra.mxu0 %v450
        %v518 = vpop.f32.mrf.mxu0
        %v519 = vadd.f32 0.0, %v518
        %v520 = vpop.f32.mrf.mxu0
        %521 = vdwg.mxu0
        %v522 = vld [vmem:[#allocation3] sm:$0xff]
        %vm523 = vcmask 523264
        %524 = vst.msk [vmem:[#allocation3] sm:$0xff] %vm523, %v519
        %v525 = vld [vmem:[%s3] sm:$0x1]
        %v527 = vlaneseq
        %v528 = vshrl.u32 %v527, 7
        %v529 = vsub.s32 0, %v528
        %v530 = vrot.slane %v525, %v529
        %v532 = vadd.f32 %v530, 0.0
        %vm533 = vcmp.lt.s32.totalorder %v443, 3
        %v534 = vrot.slane %v522, 5
        %v535 = vrot.slane %v519, 5
        %v536 = vsel %vm533, 1, 0
        %vm537 = vcmp.eq.s32.totalorder %v536, 1
        %v538 = vsel %vm537, %v534, %v535
        %v539 = vld [vmem:[%s2] sm:$0x1]
        %v540 = vlaneseq
        %v541 = vshrl.u32 %v540, 7
        %v542 = vsub.s32 0, %v541
        %v543 = vrot.slane %v539, %v542
        %v544 = vmul.f32 %v538, %v543
        %v545 = vadd.f32 %v532, %v544
        %vm546 = vcmp.lt.s32.totalorder %v443, 2
        %v547 = vrot.slane %v522, 6
        %v548 = vrot.slane %v519, 6
        %v549 = vsel %vm546, 1, 0
        %vm550 = vcmp.eq.s32.totalorder %v549, 1
        %v551 = vsel %vm550, %v547, %v548
        %v552 = vld [vmem:[%s2 + $0x1] sm:$0x1]
        %v553 = vlaneseq
        %v554 = vshrl.u32 %v553, 7
        %v555 = vsub.s32 0, %v554
        %v556 = vrot.slane %v552, %v555
        %v557 = vmul.f32 %v551, %v556
        %v558 = vadd.f32 %v545, %v557
        %vm559 = vcmp.lt.s32.totalorder %v443, 1
        %v560 = vrot.slane %v522, 7
        %v561 = vrot.slane %v519, 7
        %v562 = vsel %vm559, 1, 0
        %vm563 = vcmp.eq.s32.totalorder %v562, 1
        %v564 = vsel %vm563, %v560, %v561
        %v565 = vld [vmem:[%s2 + $0x2] sm:$0x1]
        %v566 = vlaneseq
        %v567 = vshrl.u32 %v566, 7
        %v568 = vsub.s32 0, %v567
        %v569 = vrot.slane %v565, %v568
        %v570 = vmul.f32 %v564, %v569
        %v571 = vadd.f32 %v558, %v570
        %v572 = vld [vmem:[%s2 + $0x3] sm:$0x1]
        %v573 = vlaneseq
        %v574 = vshrl.u32 %v573, 7
        %v575 = vsub.s32 0, %v574
        %v576 = vrot.slane %v572, %v575
        %v577 = vmul.f32 %v519, %v576
        %v578 = vadd.f32 %v571, %v577
        %v579 = vxor.u32 %v578, 2147483648
        %v580 = vmul.f32 %v579, 1.442695
        %v581 = vpow.pop %v580
        %v582 = vadd.f32 %v581, 1.0
        %v583 = vrcp.pop %v582
        %v584 = vmul.f32 1.0, %v583
        %v585 = vmul.f32 %v578, %v584
        %v586 = vld [vmem:[%s4] sm:$0xff]
        %v587 = vld [vmem:[%s4 + $0x8] sm:$0xff]
        %v588 = vld [vmem:[%s4 + $0x10] sm:$0xff]
        %v589 = vld [vmem:[%s4 + $0x18] sm:$0xff]
        %v590 = vld [vmem:[%s4 + $0x20] sm:$0xff]
        %v591 = vld [vmem:[%s4 + $0x28] sm:$0xff]
        %v592 = vld [vmem:[%s4 + $0x30] sm:$0xff]
        %v593 = vld [vmem:[%s4 + $0x38] sm:$0xff]
        %v595 = vsel %vm523, %v585, 0
        %597 = vmatprep.subr.mxu0 0.0
        %598 = vmatpush1.msra.mxu0 0.0
        %599 = vmatprep.subr.mxu0 0.0
        %600 = vmatpush1.msra.mxu0 0.0
        %601 = vmatprep.subr.mxu0 0.0
        %602 = vmatpush1.msra.mxu0 0.0
        %603 = vmatprep.subr.mxu0 0.0
        %604 = vmatpush1.msra.mxu0 0.0
        %605 = vmatprep.subr.mxu0 0.0
        %606 = vmatpush1.msra.mxu0 0.0
        %607 = vmatprep.subr.mxu0 0.0
        %608 = vmatpush1.msra.mxu0 0.0
        %609 = vmatprep.subr.mxu0 0.0
        %610 = vmatpush1.msra.mxu0 0.0
        %611 = vmatprep.subr.mxu0 0.0
        %612 = vmatpush1.msra.mxu0 0.0
        %613 = vmatprep.subr.mxu0 0.0
        %614 = vmatpush1.msra.mxu0 %v593
        %615 = vmatprep.subr.mxu0 0.0
        %616 = vmatpush1.msra.mxu0 %v592
        %617 = vmatprep.subr.mxu0 0.0
        %618 = vmatpush1.msra.mxu0 %v591
        %619 = vmatprep.subr.mxu0 0.0
        %620 = vmatpush1.msra.mxu0 %v590
        %621 = vmatprep.subr.mxu0 0.0
        %622 = vmatpush1.msra.mxu0 %v589
        %623 = vmatprep.subr.mxu0 0.0
        %624 = vmatpush1.msra.mxu0 %v588
        %625 = vmatprep.subr.mxu0 0.0
        %626 = vmatpush1.msra.mxu0 %v587
        %627 = vmatprep.subr.mxu0 0.0
        %628 = vmatpush1.msra.mxu0 %v586
        %629 = vmatprep.subr.mxu0 0.0
        %630 = vmatpush2.msra.mxu0 0.0
        %631 = vmatprep.subr.mxu0 0.0
        %632 = vmatpush2.msra.mxu0 0.0
        %633 = vmatprep.subr.mxu0 0.0
        %634 = vmatpush2.msra.mxu0 0.0
        %635 = vmatprep.subr.mxu0 0.0
        %636 = vmatpush2.msra.mxu0 0.0
        %637 = vmatprep.subr.mxu0 0.0
        %638 = vmatpush2.msra.mxu0 0.0
        %639 = vmatprep.subr.mxu0 0.0
        %640 = vmatpush2.msra.mxu0 0.0
        %641 = vmatprep.subr.mxu0 0.0
        %642 = vmatpush2.msra.mxu0 0.0
        %643 = vmatprep.subr.mxu0 0.0
        %644 = vmatpush2.msra.mxu0 0.0
        %645 = vmatprep.subr.mxu0 0.0
        %646 = vmatpush2.msra.mxu0 0.0
        %647 = vmatprep.subr.mxu0 0.0
        %648 = vmatpush2.msra.mxu0 0.0
        %649 = vmatprep.subr.mxu0 0.0
        %650 = vmatpush2.msra.mxu0 0.0
        %651 = vmatprep.subr.mxu0 0.0
        %652 = vmatpush2.msra.mxu0 0.0
        %653 = vmatprep.subr.mxu0 0.0
        %654 = vmatpush2.msra.mxu0 0.0
        %655 = vmatprep.subr.mxu0 0.0
        %656 = vmatpush2.msra.mxu0 0.0
        %657 = vmatprep.subr.mxu0 0.0
        %658 = vmatpush2.msra.mxu0 0.0
        %659 = vmatprep.subr.mxu0 0.0
        %660 = vmatpush2.msra.mxu0 0.0
        %661 = vmatprep.mubr.f32.mxu0 0.0
        %662 = vmatmul.mubr.f32.gmra.mxu0 %v595
        %v663 = vpop.f32.mrf.mxu0
        %v664 = vadd.f32 0.0, %v663
        %v665 = vpop.f32.mrf.mxu0
        %666 = vdwg.mxu0
        %v667 = vld [vmem:[%s5] sm:$0xff]
        %v668 = vld [vmem:[%s5 + $0x8] sm:$0xff]
        %v669 = vld [vmem:[%s5 + $0x10] sm:$0xff]
        %v670 = vld [vmem:[%s5 + $0x18] sm:$0xff]
        %v671 = vld [vmem:[%s5 + $0x20] sm:$0xff]
        %v672 = vld [vmem:[%s5 + $0x28] sm:$0xff]
        %v673 = vld [vmem:[%s5 + $0x30] sm:$0xff]
        %v674 = vld [vmem:[%s5 + $0x38] sm:$0xff]
        %v675 = vld [vmem:[%s5 + $0x40] sm:$0xff]
        %v676 = vld [vmem:[%s5 + $0x48] sm:$0xff]
        %v677 = vld [vmem:[%s5 + $0x50] sm:$0xff]
        %v678 = vld [vmem:[%s5 + $0x58] sm:$0xff]
        %v679 = vld [vmem:[%s5 + $0x60] sm:$0xff]
        %v680 = vld [vmem:[%s5 + $0x68] sm:$0xff]
        %v681 = vld [vmem:[%s5 + $0x70] sm:$0xff]
        %v682 = vld [vmem:[%s5 + $0x78] sm:$0xff]
        %v683 = vld [vmem:[%s6] sm:$0x1]
        %v685 = vlaneseq
        %v686 = vshrl.u32 %v685, 7
        %v687 = vsub.s32 0, %v686
        %v688 = vrot.slane %v683, %v687
        %690 = vmatprep.subr.mxu0 0.0
        %691 = vmatpush1.msra.mxu0 %v682
        %692 = vmatprep.subr.mxu0 0.0
        %693 = vmatpush1.msra.mxu0 %v681
        %694 = vmatprep.subr.mxu0 0.0
        %695 = vmatpush1.msra.mxu0 %v680
        %696 = vmatprep.subr.mxu0 0.0
        %697 = vmatpush1.msra.mxu0 %v679
        %698 = vmatprep.subr.mxu0 0.0
        %699 = vmatpush1.msra.mxu0 %v678
        %700 = vmatprep.subr.mxu0 0.0
        %701 = vmatpush1.msra.mxu0 %v677
        %702 = vmatprep.subr.mxu0 0.0
        %703 = vmatpush1.msra.mxu0 %v676
        %704 = vmatprep.subr.mxu0 0.0
        %705 = vmatpush1.msra.mxu0 %v675
        %706 = vmatprep.subr.mxu0 0.0
        %707 = vmatpush1.msra.mxu0 %v674
        %708 = vmatprep.subr.mxu0 0.0
        %709 = vmatpush1.msra.mxu0 %v673
        %710 = vmatprep.subr.mxu0 0.0
        %711 = vmatpush1.msra.mxu0 %v672
        %712 = vmatprep.subr.mxu0 0.0
        %713 = vmatpush1.msra.mxu0 %v671
        %714 = vmatprep.subr.mxu0 0.0
        %715 = vmatpush1.msra.mxu0 %v670
        %716 = vmatprep.subr.mxu0 0.0
        %717 = vmatpush1.msra.mxu0 %v669
        %718 = vmatprep.subr.mxu0 0.0
        %719 = vmatpush1.msra.mxu0 %v668
        %720 = vmatprep.subr.mxu0 0.0
        %721 = vmatpush1.msra.mxu0 %v667
        %722 = vmatprep.subr.mxu0 0.0
        %723 = vmatpush2.msra.mxu0 0.0
        %724 = vmatprep.subr.mxu0 0.0
        %725 = vmatpush2.msra.mxu0 0.0
        %726 = vmatprep.subr.mxu0 0.0
        %727 = vmatpush2.msra.mxu0 0.0
        %728 = vmatprep.subr.mxu0 0.0
        %729 = vmatpush2.msra.mxu0 0.0
        %730 = vmatprep.subr.mxu0 0.0
        %731 = vmatpush2.msra.mxu0 0.0
        %732 = vmatprep.subr.mxu0 0.0
        %733 = vmatpush2.msra.mxu0 0.0
        %734 = vmatprep.subr.mxu0 0.0
        %735 = vmatpush2.msra.mxu0 0.0
        %736 = vmatprep.subr.mxu0 0.0
        %737 = vmatpush2.msra.mxu0 0.0
        %738 = vmatprep.subr.mxu0 0.0
        %739 = vmatpush2.msra.mxu0 0.0
        %740 = vmatprep.subr.mxu0 0.0
        %741 = vmatpush2.msra.mxu0 0.0
        %742 = vmatprep.subr.mxu0 0.0
        %743 = vmatpush2.msra.mxu0 0.0
        %744 = vmatprep.subr.mxu0 0.0
        %745 = vmatpush2.msra.mxu0 0.0
        %746 = vmatprep.subr.mxu0 0.0
        %747 = vmatpush2.msra.mxu0 0.0
        %748 = vmatprep.subr.mxu0 0.0
        %749 = vmatpush2.msra.mxu0 0.0
        %750 = vmatprep.subr.mxu0 0.0
        %751 = vmatpush2.msra.mxu0 0.0
        %752 = vmatprep.subr.mxu0 0.0
        %753 = vmatpush2.msra.mxu0 0.0
        %754 = vmatprep.mubr.f32.mxu0 0.0
        %755 = vmatmul.mubr.f32.gmra.mxu0 %v664
        %v756 = vpop.f32.mrf.mxu0
        %v757 = vadd.f32 %v688, %v756
        %v758 = vpop.f32.mrf.mxu0
        %759 = vdwg.mxu0
        %v760 = vmax.f32 %v757, 0.0
        %vm761 = vcmp.ne.f32.partialorder %v757, %v757
        %v762 = vadd.f32 %v757, 0.0
        %v763 = vand.u32 2147483647, %v757
        %v764 = vsub.f32 0.0, %v763
        %v765 = vmul.f32 %v764, 1.442695
        %v766 = vpow.pop %v765
        %v767 = vadd.f32 %v766, 1.0
        %v768 = vlog2.pop %v767
        %v769 = vmul.f32 %v768, 0.6931472
        %v770 = vmul.f32 -0.5, %v766
        %v771 = vadd.f32 %v770, 1.0
        %v772 = vmul.f32 %v771, %v766
        %v773 = vand.u32 2147483647, %v766
        %vm774 = vcmp.lt.f32.partialorder %v773, 0.0004427343
        %v775 = vsel %vm774, %v772, %v769
        %v776 = vadd.f32 %v760, %v775
        %v777 = vsel %vm761, %v762, %v776
        %v778 = vld [vmem:[%s7] sm:$0xff]
        %v779 = vmul.f32 %v778, 1.442695
        %v780 = vpow.pop %v779
        %v781 = vsub.f32 0.0, %v780
        %v782 = vmul.f32 %v777, %v585
        %v783 = vld [vmem:[#allocation2] sm:$0xff]
        %v784 = vlaneseq
        %v785 = vshrl.u32 %v784, 7
        %v786 = vsub.s32 0, %v785
        %v787 = vrot.slane %v781, %v786
        %v788 = vmul.f32 %v777, %v787
        %v789 = vmul.f32 %v788, 1.442695
        %v790 = vpow.pop %v789
        %792 = vset.pattern.permute.xlu0 2
        %793 = vperm.xlu0 %792, %v664
        %v794 = vpop.permute.xlu0 %793
        %v796 = vmul.f32 %v782, %v794
        %v797 = vrot.slane %v790, 7
        %v798 = vsel %vm563, 1.0, %v797
        %v799 = vrot.slane %v796, 7
        %v800 = vsel %vm563, 0.0, %v799
        %v801 = vmul.f32 %v790, %v800
        %v802 = vadd.f32 %v796, %v801
        %v803 = vmul.f32 %v790, %v798
        %v804 = vrot.slane %v803, 6
        %v805 = vsel %vm550, 1.0, %v804
        %v806 = vrot.slane %v802, 6
        %v807 = vsel %vm550, 0.0, %v806
        %v808 = vmul.f32 %v803, %v807
        %v809 = vadd.f32 %v802, %v808
        %v810 = vmul.f32 %v803, %v805
        %vm811 = vcmp.lt.s32.totalorder %v443, 4
        %v812 = vrot.slane %v810, 4
        %v813 = vsel %vm811, 1, 0
        %vm814 = vcmp.eq.s32.totalorder %v813, 1
        %v815 = vsel %vm814, 1.0, %v812
        %v816 = vrot.slane %v809, 4
        %v817 = vsel %vm814, 0.0, %v816
        %v818 = vmul.f32 %v810, %v817
        %v819 = vadd.f32 %v809, %v818
        %v820 = vmul.f32 %v810, %v815
        %v821 = vlaneseq
        %v822 = vshrl.u32 %v821, 7
        %v823 = vsub.s32 0, %v822
        %v824 = vrot.slane %v783, %v823
        %v825 = vmul.f32 %v820, %v824
        %v826 = vadd.f32 %v825, %v819
        %827 = vset.pattern.permute.xlu0 10
        %828 = vperm.xlu0 %827, %v664
        %v829 = vpop.permute.xlu0 %828
        %v831 = vmul.f32 %v826, %v829
        %v832 = vadd.f32 %v831, 0.0
        %v833 = vlaneseq
        %v834 = vshrl.u32 %v833, 7
        %v835 = vsub.s32 1, %v834
        %v836 = vrot.slane %v781, %v835
        %v837 = vmul.f32 %v777, %v836
        %v838 = vmul.f32 %v837, 1.442695
        %v839 = vpow.pop %v838
        %840 = vset.pattern.permute.xlu0 3
        %841 = vperm.xlu0 %840, %v664
        %v842 = vpop.permute.xlu0 %841
        %v844 = vmul.f32 %v782, %v842
        %v845 = vrot.slane %v839, 7
        %v846 = vsel %vm563, 1.0, %v845
        %v847 = vrot.slane %v844, 7
        %v848 = vsel %vm563, 0.0, %v847
        %v849 = vmul.f32 %v839, %v848
        %v850 = vadd.f32 %v844, %v849
        %v851 = vmul.f32 %v839, %v846
        %v852 = vrot.slane %v851, 6
        %v853 = vsel %vm550, 1.0, %v852
        %v854 = vrot.slane %v850, 6
        %v855 = vsel %vm550, 0.0, %v854
        %v856 = vmul.f32 %v851, %v855
        %v857 = vadd.f32 %v850, %v856
        %v858 = vmul.f32 %v851, %v853
        %v859 = vrot.slane %v858, 4
        %v860 = vsel %vm814, 1.0, %v859
        %v861 = vrot.slane %v857, 4
        %v862 = vsel %vm814, 0.0, %v861
        %v863 = vmul.f32 %v858, %v862
        %v864 = vadd.f32 %v857, %v863
        %v865 = vmul.f32 %v858, %v860
        %v866 = vlaneseq
        %v867 = vshrl.u32 %v866, 7
        %v868 = vsub.s32 1, %v867
        %v869 = vrot.slane %v783, %v868
        %v870 = vmul.f32 %v865, %v869
        %v871 = vadd.f32 %v870, %v864
        %872 = vset.pattern.permute.xlu0 11
        %873 = vperm.xlu0 %872, %v664
        %v874 = vpop.permute.xlu0 %873
        %v876 = vmul.f32 %v871, %v874
        %v877 = vadd.f32 %v832, %v876
        %v878 = vlaneseq
        %v879 = vshrl.u32 %v878, 7
        %v880 = vsub.s32 2, %v879
        %v881 = vrot.slane %v781, %v880
        %v882 = vmul.f32 %v777, %v881
        %v883 = vmul.f32 %v882, 1.442695
        %v884 = vpow.pop %v883
        %885 = vset.pattern.permute.xlu0 4
        %886 = vperm.xlu0 %885, %v664
        %v887 = vpop.permute.xlu0 %886
        %v889 = vmul.f32 %v782, %v887
        %v890 = vrot.slane %v884, 7
        %v891 = vsel %vm563, 1.0, %v890
        %v892 = vrot.slane %v889, 7
        %v893 = vsel %vm563, 0.0, %v892
        %v894 = vmul.f32 %v884, %v893
        %v895 = vadd.f32 %v889, %v894
        %v896 = vmul.f32 %v884, %v891
        %v897 = vrot.slane %v896, 6
        %v898 = vsel %vm550, 1.0, %v897
        %v899 = vrot.slane %v895, 6
        %v900 = vsel %vm550, 0.0, %v899
        %v901 = vmul.f32 %v896, %v900
        %v902 = vadd.f32 %v895, %v901
        %v903 = vmul.f32 %v896, %v898
        %v904 = vrot.slane %v903, 4
        %v905 = vsel %vm814, 1.0, %v904
        %v906 = vrot.slane %v902, 4
        %v907 = vsel %vm814, 0.0, %v906
        %v908 = vmul.f32 %v903, %v907
        %v909 = vadd.f32 %v902, %v908
        %v910 = vmul.f32 %v903, %v905
        %v911 = vlaneseq
        %v912 = vshrl.u32 %v911, 7
        %v913 = vsub.s32 2, %v912
        %v914 = vrot.slane %v783, %v913
        %v915 = vmul.f32 %v910, %v914
        %v916 = vadd.f32 %v915, %v909
        %917 = vset.pattern.permute.xlu0 12
        %918 = vperm.xlu0 %917, %v664
        %v919 = vpop.permute.xlu0 %918
        %v921 = vmul.f32 %v916, %v919
        %v922 = vadd.f32 %v877, %v921
        %v923 = vlaneseq
        %v924 = vshrl.u32 %v923, 7
        %v925 = vsub.s32 3, %v924
        %v926 = vrot.slane %v781, %v925
        %v927 = vmul.f32 %v777, %v926
        %v928 = vmul.f32 %v927, 1.442695
        %v929 = vpow.pop %v928
        %930 = vset.pattern.permute.xlu0 5
        %931 = vperm.xlu0 %930, %v664
        %v932 = vpop.permute.xlu0 %931
        %v934 = vmul.f32 %v782, %v932
        %v935 = vrot.slane %v929, 7
        %v936 = vsel %vm563, 1.0, %v935
        %v937 = vrot.slane %v934, 7
        %v938 = vsel %vm563, 0.0, %v937
        %v939 = vmul.f32 %v929, %v938
        %v940 = vadd.f32 %v934, %v939
        %v941 = vmul.f32 %v929, %v936
        %v942 = vrot.slane %v941, 6
        %v943 = vsel %vm550, 1.0, %v942
        %v944 = vrot.slane %v940, 6
        %v945 = vsel %vm550, 0.0, %v944
        %v946 = vmul.f32 %v941, %v945
        %v947 = vadd.f32 %v940, %v946
        %v948 = vmul.f32 %v941, %v943
        %v949 = vrot.slane %v948, 4
        %v950 = vsel %vm814, 1.0, %v949
        %v951 = vrot.slane %v947, 4
        %v952 = vsel %vm814, 0.0, %v951
        %v953 = vmul.f32 %v948, %v952
        %v954 = vadd.f32 %v947, %v953
        %v955 = vmul.f32 %v948, %v950
        %v956 = vlaneseq
        %v957 = vshrl.u32 %v956, 7
        %v958 = vsub.s32 3, %v957
        %v959 = vrot.slane %v783, %v958
        %v960 = vmul.f32 %v955, %v959
        %v961 = vadd.f32 %v960, %v954
        %962 = vset.pattern.permute.xlu0 13
        %963 = vperm.xlu0 %962, %v664
        %v964 = vpop.permute.xlu0 %963
        %v966 = vmul.f32 %v961, %v964
        %v967 = vadd.f32 %v922, %v966
        %v968 = vlaneseq
        %v969 = vshrl.u32 %v968, 7
        %v970 = vsub.s32 4, %v969
        %v971 = vrot.slane %v781, %v970
        %v972 = vmul.f32 %v777, %v971
        %v973 = vmul.f32 %v972, 1.442695
        %v974 = vpow.pop %v973
        %975 = vset.pattern.permute.xlu0 6
        %976 = vperm.xlu0 %975, %v664
        %v977 = vpop.permute.xlu0 %976
        %v979 = vmul.f32 %v782, %v977
        %v980 = vrot.slane %v974, 7
        %v981 = vsel %vm563, 1.0, %v980
        %v982 = vrot.slane %v979, 7
        %v983 = vsel %vm563, 0.0, %v982
        %v984 = vmul.f32 %v974, %v983
        %v985 = vadd.f32 %v979, %v984
        %v986 = vmul.f32 %v974, %v981
        %v987 = vrot.slane %v986, 6
        %v988 = vsel %vm550, 1.0, %v987
        %v989 = vrot.slane %v985, 6
        %v990 = vsel %vm550, 0.0, %v989
        %v991 = vmul.f32 %v986, %v990
        %v992 = vadd.f32 %v985, %v991
        %v993 = vmul.f32 %v986, %v988
        %v994 = vrot.slane %v993, 4
        %v995 = vsel %vm814, 1.0, %v994
        %v996 = vrot.slane %v992, 4
        %v997 = vsel %vm814, 0.0, %v996
        %v998 = vmul.f32 %v993, %v997
        %v999 = vadd.f32 %v992, %v998
        %v1000 = vmul.f32 %v993, %v995
        %v1001 = vlaneseq
        %v1002 = vshrl.u32 %v1001, 7
        %v1003 = vsub.s32 4, %v1002
        %v1004 = vrot.slane %v783, %v1003
        %v1005 = vmul.f32 %v1000, %v1004
        %v1006 = vadd.f32 %v1005, %v999
        %1007 = vset.pattern.permute.xlu0 14
        %1008 = vperm.xlu0 %1007, %v664
        %v1009 = vpop.permute.xlu0 %1008
        %v1011 = vmul.f32 %v1006, %v1009
        %v1012 = vadd.f32 %v967, %v1011
        %v1013 = vlaneseq
        %v1014 = vshrl.u32 %v1013, 7
        %v1015 = vsub.s32 5, %v1014
        %v1016 = vrot.slane %v781, %v1015
        %v1017 = vmul.f32 %v777, %v1016
        %v1018 = vmul.f32 %v1017, 1.442695
        %v1019 = vpow.pop %v1018
        %1020 = vset.pattern.permute.xlu0 7
        %1021 = vperm.xlu0 %1020, %v664
        %v1022 = vpop.permute.xlu0 %1021
        %v1024 = vmul.f32 %v782, %v1022
        %v1025 = vrot.slane %v1019, 7
        %v1026 = vsel %vm563, 1.0, %v1025
        %v1027 = vrot.slane %v1024, 7
        %v1028 = vsel %vm563, 0.0, %v1027
        %v1029 = vmul.f32 %v1019, %v1028
        %v1030 = vadd.f32 %v1024, %v1029
        %v1031 = vmul.f32 %v1019, %v1026
        %v1032 = vrot.slane %v1031, 6
        %v1033 = vsel %vm550, 1.0, %v1032
        %v1034 = vrot.slane %v1030, 6
        %v1035 = vsel %vm550, 0.0, %v1034
        %v1036 = vmul.f32 %v1031, %v1035
        %v1037 = vadd.f32 %v1030, %v1036
        %v1038 = vmul.f32 %v1031, %v1033
        %v1039 = vrot.slane %v1038, 4
        %v1040 = vsel %vm814, 1.0, %v1039
        %v1041 = vrot.slane %v1037, 4
        %v1042 = vsel %vm814, 0.0, %v1041
        %v1043 = vmul.f32 %v1038, %v1042
        %v1044 = vadd.f32 %v1037, %v1043
        %v1045 = vmul.f32 %v1038, %v1040
        %v1046 = vlaneseq
        %v1047 = vshrl.u32 %v1046, 7
        %v1048 = vsub.s32 5, %v1047
        %v1049 = vrot.slane %v783, %v1048
        %v1050 = vmul.f32 %v1045, %v1049
        %v1051 = vadd.f32 %v1050, %v1044
        %1052 = vset.pattern.permute.xlu0 15
        %1053 = vperm.xlu0 %1052, %v664
        %v1054 = vpop.permute.xlu0 %1053
        %v1056 = vmul.f32 %v1051, %v1054
        %v1057 = vadd.f32 %v1012, %v1056
        %v1058 = vlaneseq
        %v1059 = vshrl.u32 %v1058, 7
        %v1060 = vsub.s32 6, %v1059
        %v1061 = vrot.slane %v781, %v1060
        %v1062 = vmul.f32 %v777, %v1061
        %v1063 = vmul.f32 %v1062, 1.442695
        %v1064 = vpow.pop %v1063
        %1065 = vset.pattern.permute.xlu0 8
        %1066 = vperm.xlu0 %1065, %v664
        %v1067 = vpop.permute.xlu0 %1066
        %v1069 = vmul.f32 %v782, %v1067
        %v1070 = vrot.slane %v1064, 7
        %v1071 = vsel %vm563, 1.0, %v1070
        %v1072 = vrot.slane %v1069, 7
        %v1073 = vsel %vm563, 0.0, %v1072
        %v1074 = vmul.f32 %v1064, %v1073
        %v1075 = vadd.f32 %v1069, %v1074
        %v1076 = vmul.f32 %v1064, %v1071
        %v1077 = vrot.slane %v1076, 6
        %v1078 = vsel %vm550, 1.0, %v1077
        %v1079 = vrot.slane %v1075, 6
        %v1080 = vsel %vm550, 0.0, %v1079
        %v1081 = vmul.f32 %v1076, %v1080
        %v1082 = vadd.f32 %v1075, %v1081
        %v1083 = vmul.f32 %v1076, %v1078
        %v1084 = vrot.slane %v1083, 4
        %v1085 = vsel %vm814, 1.0, %v1084
        %v1086 = vrot.slane %v1082, 4
        %v1087 = vsel %vm814, 0.0, %v1086
        %v1088 = vmul.f32 %v1083, %v1087
        %v1089 = vadd.f32 %v1082, %v1088
        %v1090 = vmul.f32 %v1083, %v1085
        %v1091 = vlaneseq
        %v1092 = vshrl.u32 %v1091, 7
        %v1093 = vsub.s32 6, %v1092
        %v1094 = vrot.slane %v783, %v1093
        %v1095 = vmul.f32 %v1090, %v1094
        %v1096 = vadd.f32 %v1095, %v1089
        %1097 = vset.pattern.permute.xlu0 16
        %1098 = vperm.xlu0 %1097, %v664
        %v1099 = vpop.permute.xlu0 %1098
        %v1101 = vmul.f32 %v1096, %v1099
        %v1102 = vadd.f32 %v1057, %v1101
        %v1103 = vlaneseq
        %v1104 = vshrl.u32 %v1103, 7
        %v1105 = vsub.s32 7, %v1104
        %v1106 = vrot.slane %v781, %v1105
        %v1107 = vmul.f32 %v777, %v1106
        %v1108 = vmul.f32 %v1107, 1.442695
        %v1109 = vpow.pop %v1108
        %1110 = vset.pattern.permute.xlu0 9
        %1111 = vperm.xlu0 %1110, %v664
        %v1112 = vpop.permute.xlu0 %1111
        %v1114 = vmul.f32 %v782, %v1112
        %v1115 = vrot.slane %v1109, 7
        %v1116 = vsel %vm563, 1.0, %v1115
        %v1117 = vrot.slane %v1114, 7
        %v1118 = vsel %vm563, 0.0, %v1117
        %v1119 = vmul.f32 %v1109, %v1118
        %v1120 = vadd.f32 %v1114, %v1119
        %v1121 = vmul.f32 %v1109, %v1116
        %v1122 = vrot.slane %v1121, 6
        %v1123 = vsel %vm550, 1.0, %v1122
        %v1124 = vrot.slane %v1120, 6
        %v1125 = vsel %vm550, 0.0, %v1124
        %v1126 = vmul.f32 %v1121, %v1125
        %v1127 = vadd.f32 %v1120, %v1126
        %v1128 = vmul.f32 %v1121, %v1123
        %v1129 = vrot.slane %v1128, 4
        %v1130 = vsel %vm814, 1.0, %v1129
        %v1131 = vrot.slane %v1127, 4
        %v1132 = vsel %vm814, 0.0, %v1131
        %v1133 = vmul.f32 %v1128, %v1132
        %v1134 = vadd.f32 %v1127, %v1133
        %v1135 = vmul.f32 %v1128, %v1130
        %v1136 = vlaneseq
        %v1137 = vshrl.u32 %v1136, 7
        %v1138 = vsub.s32 7, %v1137
        %v1139 = vrot.slane %v783, %v1138
        %v1140 = vmul.f32 %v1135, %v1139
        %v1141 = vadd.f32 %v1140, %v1134
        %1142 = vset.pattern.permute.xlu0 17
        %1143 = vperm.xlu0 %1142, %v664
        %v1144 = vpop.permute.xlu0 %1143
        %v1146 = vmul.f32 %v1141, %v1144
        %v1147 = vadd.f32 %v1102, %v1146
        %v1149 = vrot.slane %v826, 7
        %v1152 = vrot.slane %v871, 6
        %v1155 = vrot.slane %v916, 5
        %v1158 = vrot.slane %v961, 4
        %v1161 = vrot.slane %v1006, 3
        %v1164 = vrot.slane %v1051, 2
        %v1167 = vrot.slane %v1096, 1
        %vm1169 = vcmask 1040384
        %v1170 = vsel %vm1169, %v1149, %v1152
        %vm1171 = vcmask 1041408
        %v1172 = vsel %vm1171, %v1170, %v1155
        %vm1173 = vcmask 1042432
        %v1174 = vsel %vm1173, %v1172, %v1158
        %vm1175 = vcmask 1043456
        %v1176 = vsel %vm1175, %v1174, %v1161
        %vm1177 = vcmask 1044480
        %v1178 = vsel %vm1177, %v1176, %v1164
        %vm1179 = vcmask 1045504
        %v1180 = vsel %vm1179, %v1178, %v1167
        %vm1181 = vcmask 1046528
        %v1182 = vsel %vm1181, %v1180, %v1141
        %1183 = vst.msk [vmem:[#allocation2] sm:$0xff] %vm523, %v1182
        %v1184 = vld [vmem:[%s8] sm:$0x1]
        %v1186 = vlaneseq
        %v1187 = vshrl.u32 %v1186, 7
        %v1188 = vsub.s32 0, %v1187
        %v1189 = vrot.slane %v1184, %v1188
        %v1191 = vmul.f32 %v585, %v1189
        %v1192 = vadd.f32 %v1147, %v1191
        %v1193 = vxor.u32 %v519, 2147483648
        %v1194 = vmul.f32 %v1193, 1.442695
        %v1195 = vpow.pop %v1194
        %v1196 = vadd.f32 %v1195, 1.0
        %v1197 = vrcp.pop %v1196
        %v1198 = vmul.f32 1.0, %v1197
        %v1199 = vmul.f32 %v519, %v1198
        %1201 = vrot.lane.b32.xlu0 %v1199, 64
        %v1202 = vpop.permute.xlu0 %1201
        %v1204 = vmul.f32 %v1192, %v1202
        %v1205 = vld [vmem:[%s9] sm:$0xff]
        %v1206 = vld [vmem:[%s9 + $0x8] sm:$0xff]
        %v1207 = vld [vmem:[%s9 + $0x10] sm:$0xff]
        %v1208 = vld [vmem:[%s9 + $0x18] sm:$0xff]
        %v1209 = vld [vmem:[%s9 + $0x20] sm:$0xff]
        %v1210 = vld [vmem:[%s9 + $0x28] sm:$0xff]
        %v1211 = vld [vmem:[%s9 + $0x30] sm:$0xff]
        %v1212 = vld [vmem:[%s9 + $0x38] sm:$0xff]
        %v1214 = vsel %vm523, %v1204, 0
        %1216 = vmatprep.subr.mxu0 0.0
        %1217 = vmatpush1.msra.mxu0 0.0
        %1218 = vmatprep.subr.mxu0 0.0
        %1219 = vmatpush1.msra.mxu0 0.0
        %1220 = vmatprep.subr.mxu0 0.0
        %1221 = vmatpush1.msra.mxu0 0.0
        %1222 = vmatprep.subr.mxu0 0.0
        %1223 = vmatpush1.msra.mxu0 0.0
        %1224 = vmatprep.subr.mxu0 0.0
        %1225 = vmatpush1.msra.mxu0 0.0
        %1226 = vmatprep.subr.mxu0 0.0
        %1227 = vmatpush1.msra.mxu0 0.0
        %1228 = vmatprep.subr.mxu0 0.0
        %1229 = vmatpush1.msra.mxu0 0.0
        %1230 = vmatprep.subr.mxu0 0.0
        %1231 = vmatpush1.msra.mxu0 0.0
        %1232 = vmatprep.subr.mxu0 0.0
        %1233 = vmatpush1.msra.mxu0 %v1212
        %1234 = vmatprep.subr.mxu0 0.0
        %1235 = vmatpush1.msra.mxu0 %v1211
        %1236 = vmatprep.subr.mxu0 0.0
        %1237 = vmatpush1.msra.mxu0 %v1210
        %1238 = vmatprep.subr.mxu0 0.0
        %1239 = vmatpush1.msra.mxu0 %v1209
        %1240 = vmatprep.subr.mxu0 0.0
        %1241 = vmatpush1.msra.mxu0 %v1208
        %1242 = vmatprep.subr.mxu0 0.0
        %1243 = vmatpush1.msra.mxu0 %v1207
        %1244 = vmatprep.subr.mxu0 0.0
        %1245 = vmatpush1.msra.mxu0 %v1206
        %1246 = vmatprep.subr.mxu0 0.0
        %1247 = vmatpush1.msra.mxu0 %v1205
        %1248 = vmatprep.subr.mxu0 0.0
        %1249 = vmatpush2.msra.mxu0 0.0
        %1250 = vmatprep.subr.mxu0 0.0
        %1251 = vmatpush2.msra.mxu0 0.0
        %1252 = vmatprep.subr.mxu0 0.0
        %1253 = vmatpush2.msra.mxu0 0.0
        %1254 = vmatprep.subr.mxu0 0.0
        %1255 = vmatpush2.msra.mxu0 0.0
        %1256 = vmatprep.subr.mxu0 0.0
        %1257 = vmatpush2.msra.mxu0 0.0
        %1258 = vmatprep.subr.mxu0 0.0
        %1259 = vmatpush2.msra.mxu0 0.0
        %1260 = vmatprep.subr.mxu0 0.0
        %1261 = vmatpush2.msra.mxu0 0.0
        %1262 = vmatprep.subr.mxu0 0.0
        %1263 = vmatpush2.msra.mxu0 0.0
        %1264 = vmatprep.subr.mxu0 0.0
        %1265 = vmatpush2.msra.mxu0 0.0
        %1266 = vmatprep.subr.mxu0 0.0
        %1267 = vmatpush2.msra.mxu0 0.0
        %1268 = vmatprep.subr.mxu0 0.0
        %1269 = vmatpush2.msra.mxu0 0.0
        %1270 = vmatprep.subr.mxu0 0.0
        %1271 = vmatpush2.msra.mxu0 0.0
        %1272 = vmatprep.subr.mxu0 0.0
        %1273 = vmatpush2.msra.mxu0 0.0
        %1274 = vmatprep.subr.mxu0 0.0
        %1275 = vmatpush2.msra.mxu0 0.0
        %1276 = vmatprep.subr.mxu0 0.0
        %1277 = vmatpush2.msra.mxu0 0.0
        %1278 = vmatprep.subr.mxu0 0.0
        %1279 = vmatpush2.msra.mxu0 0.0
        %1280 = vmatprep.mubr.f32.mxu0 0.0
        %1281 = vmatmul.mubr.f32.gmra.mxu0 %v1214
        %v1282 = vpop.f32.mrf.mxu0
        %v1283 = vadd.f32 %v441, %v1282
        %v1284 = vpop.f32.mrf.mxu0
        %1285 = vdwg.mxu0
        %v1286 = vsel %vm448, %v1283, 0.0
        %1287 = vadd.xlane.f32.xlu0 %v1286
        %v1288 = vpop.xlane.xlu0 %1287
        %v1289 = vrcp.pop 32.0
        %v1290 = vmul.f32 %v1288, %v1289
        %v1291 = vsub.f32 %v1283, %v1290
        %v1292 = vmul.f32 %v1291, %v1291
        %v1293 = vsel %vm448, %v1292, 0.0
        %1294 = vadd.xlane.f32.xlu0 %v1293
        %v1295 = vpop.xlane.xlu0 %1294
        %v1296 = vmul.f32 %v1295, %v1289
        %v1297 = vadd.f32 %v1296, 1e-05
        %v1298 = vrsqrt.pop %v1297
        %v1299 = vmul.f32 %v1291, %v1298
        %v1300 = vld [vmem:[%s10] sm:$0x1]
        %v1302 = vlaneseq
        %v1303 = vshrl.u32 %v1302, 7
        %v1304 = vsub.s32 0, %v1303
        %v1305 = vrot.slane %v1300, %v1304
        %v1307 = vmul.f32 %v1299, %v1305
        %v1308 = vld [vmem:[%s11] sm:$0x1]
        %v1310 = vlaneseq
        %v1311 = vshrl.u32 %v1310, 7
        %v1312 = vsub.s32 0, %v1311
        %v1313 = vrot.slane %v1308, %v1312
        %v1315 = vadd.f32 %v1307, %v1313
        %1316 = vst.msk [vmem:[%s426] sm:$0xff] %vm448, %v1315
        %s1317 = sand.u32 %s307, 1
        %s1318 = scalar_lea.sflag [#allocation5], %s1317
        %s1319 = sand.u32 %s307, 1
        %s1320 = smul.addr %s1319, 8
        %s1321 = scalar_lea.vmem [#allocation4], %s1320
        // Predicated region
        $region73: #{tpu_custom_call.1} parent=67 // pred_check
          %p1322 = pneg %p317
        $region74: #{tpu_custom_call.1} parent=67 // pred_check_branch
          %1324 = sbr.rel (%p1322) target = $region76
        $region75: #{tpu_custom_call.1} parent=67 // pred_region
          %s1326 = ssub.s32 128, 128
          %1327 = vsyncadd %s1318, %s1326
          %s1328 = sadd.s32 %s31, %s30
          %s1329 = smul.addr %s1328, 128
          %s1330 = scalar_lea.hbm %s12, %s1329
          %s1332 = sshll.u32 %s1321, 4
          %s1333 = int_to_ptr.vmem [resolvable:$true] %s1332
          %1335 = dma.vmem_to_hbm [thread:$0]  %s1333, 128, %s1330, %s1318
        $region76: #{tpu_custom_call.1} parent=67 // pred_fallthru
          _
      $region68: #{tpu_custom_call.1} parent=5 // pred_fallthru
        _
      %p1336 = scmp.le.s32.totalorder 2, %s21
      // Predicated region
      $region77: #{tpu_custom_call.1} parent=5 // pred_check
        %p1337 = pneg %p1336
      $region78: #{tpu_custom_call.1} parent=5 // pred_check_branch
        %1339 = sbr.rel (%p1337) target = $region80
      $region79: #{tpu_custom_call.1} parent=5 // pred_region
        %s1340 = ssub.s32 %s21, 2
        // Predicated region
        $region81: #{tpu_custom_call.1} parent=79 // pred_check
          %p1341 = pneg %p323
        $region82: #{tpu_custom_call.1} parent=79 // pred_check_branch
          %1343 = sbr.rel (%p1341) target = $region84
        $region83: #{tpu_custom_call.1} parent=79 // pred_region
          %s1344 = sand.u32 %s308, 1
          %s1345 = scalar_lea.sflag [#allocation5], %s1344
          %s1346 = sand.u32 %s308, 1
          %s1347 = smul.addr %s1346, 8
          %s1348 = scalar_lea.vmem [#allocation4], %s1347
          %1349 = dma.done %s1345, 128
        $region84: #{tpu_custom_call.1} parent=79 // pred_fallthru
          _
      $region80: #{tpu_custom_call.1} parent=5 // pred_fallthru
        _
    $region6: #{tpu_custom_call.1} parent=1 // loop_footer
      %s25 = sadd.s32 1, %s21
    $region7: #{tpu_custom_call.1} parent=1 // loop_footer_branch
      %20 = sbr.rel target = $region3
    $region8: #{tpu_custom_call.1} parent=1 // loop_exit
      _
    %1350 = vsyncpa [#allocation5], 1
    %s1351 = scalar_lea.sflag [#allocation5], 1
    %1352 = vsyncpa %s1351, 1

</llo_original>
